<compile_context>
chip_gen: v5e
topology: v5e:2x2
jax: 0.10.0
libtpu: 0.0.40
codegen_flags: <defaults>
</compile_context>

<pallas_src>
import functools

import jax
import jax.numpy as jnp
import numpy as np
from jax.experimental import pallas as pl
from jax.experimental.pallas import tpu as pltpu


# ----------------------------------------------------------------------------
# Model / loss configuration
# ----------------------------------------------------------------------------
N_HEADS = 9
HEAD_SPLITS = {'hm': (0, 4), 'wh': (4, 6), 'dim': (6, 9)}
LOSS_WEIGHTS = {'hm': 1.0, 'wh': 0.1, 'dim': 1.0}
EPS = 1e-4

HM_LO, HM_HI = HEAD_SPLITS['hm']
WH_LO, WH_HI = HEAD_SPLITS['wh']
DIM_LO, DIM_HI = HEAD_SPLITS['dim']
HM_C, WH_C, DIM_C = HM_HI - HM_LO, WH_HI - WH_LO, DIM_HI - DIM_LO


def _tap_masks(H, W):
    """(9, 1, H*W) f32 validity masks for the 3x3 taps (zero-padding border)."""
    y = np.arange(H * W) // W
    x = np.arange(H * W) % W
    masks = []
    for dy in range(3):
        for dx in range(3):
            yy = y + dy - 1
            xx = x + dx - 1
            valid = (yy >= 0) & (yy < H) & (xx >= 0) & (xx < W)
            masks.append(valid.astype(np.float32))
    return jnp.asarray(np.stack(masks).reshape(N_HEADS, 1, H * W))


# ----------------------------------------------------------------------------
# Fused kernel bodies
# ----------------------------------------------------------------------------
def _conv_heads(x_ref, taps_ref, w_bb_ref, b_bb_ref, w_hd_ref, b_hd_ref, width):
    """3x3 conv (+bias, ReLU) then fused 1x1 head conv on one image.

    x_ref block: (1, C, HW) f32.  Returns headsT of shape (N_HEADS, HW) f32.
    The 3x3 conv is built from 9 lane-rolled, border-masked copies of the
    flattened image, contracted on the MXU in bf16 with f32 accumulation.
    """
    x = x_ref[0]                                   # (C, HW) f32
    hw = x.shape[1]
    hidden = b_bb_ref.shape[0]

    feat = jnp.zeros((hidden, hw), jnp.float32)
    for dy in range(3):
        for dx in range(3):
            t = dy * 3 + dx
            off = (dy - 1) * width + (dx - 1)      # flat input offset for this tap
            if off == 0:                           # center tap: no shift, no mask
                masked = x
            else:
                shifted = pltpu.roll(x, (-off) % hw, axis=1)
                masked = shifted * taps_ref[t]     # (1, HW) mask broadcasts over C
            feat = feat + jnp.dot(w_bb_ref[t], masked.astype(jnp.bfloat16),
                                  preferred_element_type=jnp.float32)

    feat = jnp.maximum(feat + b_bb_ref[...], 0.0)  # bias + ReLU, (hidden, HW) f32
    heads = jnp.dot(w_hd_ref[...], feat.astype(jnp.bfloat16),
                    preferred_element_type=jnp.float32) + b_hd_ref[...]
    return heads                                   # (N_HEADS, HW) f32


def _train_kernel(x_ref, taps_ref, w_bb_ref, b_bb_ref, w_hd_ref, b_hd_ref,
                  hm_gt_ref, wh_gt_ref, dim_gt_ref, mask_ref,
                  heads_ref, hm_loss_ref, wh_loss_ref, dim_loss_ref,
                  acc_ref, *, width):
    n = pl.program_id(0)

    @pl.when(n == 0)
    def _init():
        for i in range(6):
            acc_ref[i] = 0.0

    heads = _conv_heads(x_ref, taps_ref, w_bb_ref, b_bb_ref,
                        w_hd_ref, b_hd_ref, width)
    heads_ref[0, :, :] = heads                     # lane-dense (9, HW) store

    # ---- CenterNet focal loss on the heatmap head (partial sums) ----------
    gt = hm_gt_ref[0]                              # (4, HW) f32
    pred = jnp.clip(jax.nn.sigmoid(heads[HM_LO:HM_HI, :]), EPS, 1.0 - EPS)
    pos = (gt == 1.0).astype(jnp.float32)
    neg = 1.0 - pos
    omg = 1.0 - gt
    neg_w = (omg * omg) * (omg * omg)              # (1 - gt)^4 without pow/EUP
    omp = 1.0 - pred
    pos_loss = jnp.log(pred) * (omp * omp) * pos
    neg_loss = jnp.log(omp) * (pred * pred) * neg_w * neg
    acc_ref[0] = acc_ref[0] + jnp.sum(pos)
    acc_ref[1] = acc_ref[1] + jnp.sum(pos_loss)
    acc_ref[2] = acc_ref[2] + jnp.sum(neg_loss)

    # ---- masked L1 on 'wh' and 'dim' heads (partial sums) ------------------
    m = mask_ref[0]                                # (1, HW), broadcasts over C
    acc_ref[3] = acc_ref[3] + jnp.sum(jnp.abs(heads[WH_LO:WH_HI, :] - wh_gt_ref[0]) * m)
    acc_ref[4] = acc_ref[4] + jnp.sum(jnp.abs(heads[DIM_LO:DIM_HI, :] - dim_gt_ref[0]) * m)
    acc_ref[5] = acc_ref[5] + jnp.sum(m)

    @pl.when(n == pl.num_programs(0) - 1)
    def _finalize():
        num_pos = acc_ref[0]
        pos_sum = acc_ref[1]
        neg_sum = acc_ref[2]
        hm_loss_ref[0, 0] = jnp.where(
            num_pos > 0.0,
            -(pos_sum + neg_sum) / jnp.maximum(num_pos, 1.0),
            -neg_sum)
        denom = acc_ref[5] + EPS
        wh_loss_ref[0, 0] = acc_ref[3] / denom
        dim_loss_ref[0, 0] = acc_ref[4] / denom


def _unlabel_kernel(x_ref, taps_ref, w_bb_ref, b_bb_ref, w_hd_ref, b_hd_ref,
                    heads_ref, mean_ref, acc_ref, *, width, inv_count):
    n = pl.program_id(0)

    @pl.when(n == 0)
    def _init():
        acc_ref[0] = 0.0

    heads = _conv_heads(x_ref, taps_ref, w_bb_ref, b_bb_ref,
                        w_hd_ref, b_hd_ref, width)
    heads_ref[0, :, :] = heads
    acc_ref[0] = acc_ref[0] + jnp.sum(heads[DIM_LO:DIM_HI, :])

    @pl.when(n == pl.num_programs(0) - 1)
    def _finalize():
        mean_ref[0, 0] = acc_ref[0] * inv_count


# ----------------------------------------------------------------------------
# pallas_call wrappers
# ----------------------------------------------------------------------------
def _scalar_out_spec():
    return pl.BlockSpec((1, 1), lambda n: (0, 0),
                        memory_space=pltpu.MemorySpace.SMEM)


def _fused_train_call(prepped, x3, taps, hm3, wh3, dim3, m3, W):
    N, C, HW = x3.shape
    hidden = prepped['b_bb'].shape[0]
    heads_flat, hm_l, wh_l, dim_l = pl.pallas_call(
        functools.partial(_train_kernel, width=W),
        out_shape=(
            jax.ShapeDtypeStruct((N, N_HEADS, HW), jnp.float32),
            jax.ShapeDtypeStruct((1, 1), jnp.float32),
            jax.ShapeDtypeStruct((1, 1), jnp.float32),
            jax.ShapeDtypeStruct((1, 1), jnp.float32),
        ),
        grid=(N,),
        in_specs=[
            pl.BlockSpec((1, C, HW), lambda n: (n, 0, 0)),            # input image
            pl.BlockSpec((N_HEADS, 1, HW), lambda n: (0, 0, 0)),      # tap masks
            pl.BlockSpec((N_HEADS, hidden, C), lambda n: (0, 0, 0)),  # w_bb^T (bf16)
            pl.BlockSpec((hidden, 1), lambda n: (0, 0)),              # b_bb
            pl.BlockSpec((N_HEADS, hidden), lambda n: (0, 0)),        # w_hd^T (bf16)
            pl.BlockSpec((N_HEADS, 1), lambda n: (0, 0)),             # b_hd
            pl.BlockSpec((1, HM_C, HW), lambda n: (n, 0, 0)),         # hm gt
            pl.BlockSpec((1, WH_C, HW), lambda n: (n, 0, 0)),         # wh gt
            pl.BlockSpec((1, DIM_C, HW), lambda n: (n, 0, 0)),        # dim gt
            pl.BlockSpec((1, 1, HW), lambda n: (n, 0, 0)),            # mask
        ],
        out_specs=(
            pl.BlockSpec((1, N_HEADS, HW), lambda n: (n, 0, 0)),
            _scalar_out_spec(), _scalar_out_spec(), _scalar_out_spec(),
        ),
        scratch_shapes=[pltpu.SMEM((8,), jnp.float32)],
        compiler_params=pltpu.CompilerParams(
            # loss accumulators are carried across grid steps -> sequential axis
            dimension_semantics=("arbitrary",)),
    )(x3, taps, prepped['w_bb'], prepped['b_bb'], prepped['w_hd'], prepped['b_hd'],
      hm3, wh3, dim3, m3)
    return heads_flat, hm_l[0, 0], wh_l[0, 0], dim_l[0, 0]


def _fused_unlabel_call(prepped, x3, taps, W):
    N, C, HW = x3.shape
    hidden = prepped['b_bb'].shape[0]
    inv_count = 1.0 / float(N * DIM_C * HW)
    heads_flat, dim_mean = pl.pallas_call(
        functools.partial(_unlabel_kernel, width=W, inv_count=inv_count),
        out_shape=(
            jax.ShapeDtypeStruct((N, N_HEADS, HW), jnp.float32),
            jax.ShapeDtypeStruct((1, 1), jnp.float32),
        ),
        grid=(N,),
        in_specs=[
            pl.BlockSpec((1, C, HW), lambda n: (n, 0, 0)),
            pl.BlockSpec((N_HEADS, 1, HW), lambda n: (0, 0, 0)),
            pl.BlockSpec((N_HEADS, hidden, C), lambda n: (0, 0, 0)),
            pl.BlockSpec((hidden, 1), lambda n: (0, 0)),
            pl.BlockSpec((N_HEADS, hidden), lambda n: (0, 0)),
            pl.BlockSpec((N_HEADS, 1), lambda n: (0, 0)),
        ],
        out_specs=(
            pl.BlockSpec((1, N_HEADS, HW), lambda n: (n, 0, 0)),
            _scalar_out_spec(),
        ),
        scratch_shapes=[pltpu.SMEM((1,), jnp.float32)],
        compiler_params=pltpu.CompilerParams(dimension_semantics=("arbitrary",)),
    )(x3, taps, prepped['w_bb'], prepped['b_bb'], prepped['w_hd'], prepped['b_hd'])
    return heads_flat, dim_mean[0, 0]


def _split_heads(heads_flat, N, H, W):
    """(N, 9, H*W) -> NCHW head dict via pure slice + reshape (no transposes)."""
    out = {}
    for name, (lo, hi) in HEAD_SPLITS.items():
        out[name] = heads_flat[:, lo:hi, :].reshape(N, hi - lo, H, W)
    return out


@jax.jit
def _forward_train(prepped, x_nchw, hm_gt, wh_gt, dim_gt, mask):
    N, C, H, W = x_nchw.shape
    HW = H * W
    taps = _tap_masks(H, W)
    heads_flat, hm_l, wh_l, dim_l = _fused_train_call(
        prepped,
        x_nchw.reshape(N, C, HW), taps,
        hm_gt.reshape(N, HM_C, HW), wh_gt.reshape(N, WH_C, HW),
        dim_gt.reshape(N, DIM_C, HW), mask.reshape(N, 1, HW),
        W)
    return _split_heads(heads_flat, N, H, W), hm_l, wh_l, dim_l


@jax.jit
def _forward_unlabel(prepped, x_nchw):
    N, C, H, W = x_nchw.shape
    taps = _tap_masks(H, W)
    heads_flat, dim_mean = _fused_unlabel_call(
        prepped, x_nchw.reshape(N, C, H * W), taps, W)
    return _split_heads(heads_flat, N, H, W), dim_mean


# ----------------------------------------------------------------------------
# Synthetic model, loss combine, and the ModelWithLoss wrapper
# ----------------------------------------------------------------------------
def make_params(c_in=3, hidden=32, n_heads=N_HEADS, key=jax.random.PRNGKey(0)):
    k1, k2, k3, k4 = jax.random.split(key, 4)
    return {
        'w_bb': 0.1 * jax.random.normal(k1, (9 * c_in, hidden), jnp.float32),
        'b_bb': 0.01 * jax.random.normal(k2, (hidden,), jnp.float32),
        'w_hd': 0.1 * jax.random.normal(k3, (hidden, n_heads), jnp.float32),
        'b_hd': 0.01 * jax.random.normal(k4, (n_heads,), jnp.float32),
    }


class TinyCenterNet:
    """Synthetic CenterNet-ish detector; holds MXU-ready (transposed, bf16) params."""

    def __init__(self, params):
        c_in = params['w_bb'].shape[0] // 9
        hidden = params['w_bb'].shape[1]
        n_heads = params['w_hd'].shape[1]
        self.prepped = {
            # (9*C, hidden) -> (9, hidden, C): per-tap transposed weights in bf16
            'w_bb': params['w_bb'].reshape(9, c_in, hidden)
                                  .transpose(0, 2, 1).astype(jnp.bfloat16),
            'b_bb': params['b_bb'].reshape(hidden, 1).astype(jnp.float32),
            'w_hd': params['w_hd'].T.astype(jnp.bfloat16),            # (9, hidden)
            'b_hd': params['b_hd'].reshape(n_heads, 1).astype(jnp.float32),
        }

    def __call__(self, x_nchw):
        out, _ = _forward_unlabel(self.prepped, x_nchw)
        return [out]


def det_loss_combine(hm_l, wh_l, dim_l):
    total = (LOSS_WEIGHTS['hm'] * hm_l + LOSS_WEIGHTS['wh'] * wh_l
             + LOSS_WEIGHTS['dim'] * dim_l)
    return total, {'loss': total, 'hm_loss': hm_l, 'wh_loss': wh_l, 'dim_loss': dim_l}


class ModelWithLoss:
    """JAX/Pallas port of src/lib/trains/base_trainer.py::ModelWithLoss.forward.

    The model forward and the loss are executed in ONE fused Pallas kernel:
    the conv features / head tensors stay in VMEM, only the returned head
    tensor and the loss scalars reach HBM.
    """

    def __init__(self, model, loss):
        self.model = model
        self.loss = loss

    def __call__(self, batch, unlabel=False, phase=None):
        if unlabel:
            out_last, dim_mean = _forward_unlabel(self.model.prepped, batch['input'])
            return out_last, dim_mean, {}
        out_last, hm_l, wh_l, dim_l = _forward_train(
            self.model.prepped, batch['input'],
            batch['hm'], batch['wh'], batch['dim'], batch['mask'])
        loss, loss_stats = self.loss(hm_l, wh_l, dim_l)
        return out_last, loss, loss_stats


# ----------------------------------------------------------------------------
if __name__ == "__main__":
    key = jax.random.PRNGKey(0)
    k_in, k_hm, k_wh, k_dim, k_mask, k_par = jax.random.split(key, 6)

    N, C, H, W = 2, 3, 16, 16
    x = jax.random.normal(k_in, (N, C, H, W), jnp.float32)

    # synthetic ground truth (heatmap has some exact-1 positives for focal loss)
    u = jax.random.uniform(k_hm, (N, HM_C, H, W), jnp.float32)
    hm_gt = jnp.where(u > 0.97, 1.0, 0.5 * u)
    wh_gt = jax.random.normal(k_wh, (N, WH_C, H, W), jnp.float32)
    dim_gt = jax.random.normal(k_dim, (N, DIM_C, H, W), jnp.float32)
    mask = (jax.random.uniform(k_mask, (N, 1, H, W)) > 0.8).astype(jnp.float32)

    batch = {'input': x, 'hm': hm_gt, 'wh': wh_gt, 'dim': dim_gt, 'mask': mask}

    params = make_params(c_in=C, hidden=32, n_heads=N_HEADS, key=k_par)
    model_with_loss = ModelWithLoss(TinyCenterNet(params), det_loss_combine)

    # labeled path: fused model + focal/L1 loss
    out_last, loss, loss_stats = model_with_loss(batch, unlabel=False, phase='train')
    jax.block_until_ready((out_last, loss, loss_stats))

    # unlabeled path: outputs[-1]['dim'].mean(), fused into the same forward kernel
    out_last_u, loss_u, stats_u = model_with_loss(batch, unlabel=True)
    jax.block_until_ready((out_last_u, loss_u))

    print("KERNEL_OK")
</pallas_src>

<mosaic_0001>
module attributes {stable_mosaic.version = 11 : i64} {
  func.func @_train_kernel(%arg0: i32, %arg1: memref<1x3x256xf32, #tpu.memory_space<vmem>>, %arg2: memref<9x1x256xf32, #tpu.memory_space<vmem>>, %arg3: memref<9x32x3xbf16, #tpu.memory_space<vmem>>, %arg4: memref<32x1xf32, #tpu.memory_space<vmem>>, %arg5: memref<9x32xbf16, #tpu.memory_space<vmem>>, %arg6: memref<9x1xf32, #tpu.memory_space<vmem>>, %arg7: memref<1x4x256xf32, #tpu.memory_space<vmem>>, %arg8: memref<1x2x256xf32, #tpu.memory_space<vmem>>, %arg9: memref<1x3x256xf32, #tpu.memory_space<vmem>>, %arg10: memref<1x1x256xf32, #tpu.memory_space<vmem>>, %arg11: memref<1x9x256xf32, #tpu.memory_space<vmem>>, %arg12: memref<1x1xf32, #tpu.memory_space<smem>>, %arg13: memref<1x1xf32, #tpu.memory_space<smem>>, %arg14: memref<1x1xf32, #tpu.memory_space<smem>>, %arg15: memref<8xf32, #tpu.memory_space<smem>>) attributes {dimension_semantics = [#tpu.dimension_semantics<arbitrary>], iteration_bounds = array<i64: 2>, scalar_prefetch = 0 : i64, scratch_operands = 1 : i64, tpu.core_type = #tpu.core_type<tc>, window_params = [{transform_indices = @transform_0, window_bounds = array<i64: 1, 3, 256>}, {pipeline_mode = #tpu.pipeline_mode<synchronous>, transform_indices = @transform_1, window_bounds = array<i64: 9, 1, 256>}, {pipeline_mode = #tpu.pipeline_mode<synchronous>, transform_indices = @transform_2, window_bounds = array<i64: 9, 32, 3>}, {pipeline_mode = #tpu.pipeline_mode<synchronous>, transform_indices = @transform_3, window_bounds = array<i64: 32, 1>}, {pipeline_mode = #tpu.pipeline_mode<synchronous>, transform_indices = @transform_4, window_bounds = array<i64: 9, 32>}, {pipeline_mode = #tpu.pipeline_mode<synchronous>, transform_indices = @transform_5, window_bounds = array<i64: 9, 1>}, {transform_indices = @transform_6, window_bounds = array<i64: 1, 4, 256>}, {transform_indices = @transform_7, window_bounds = array<i64: 1, 2, 256>}, {transform_indices = @transform_8, window_bounds = array<i64: 1, 3, 256>}, {transform_indices = @transform_9, window_bounds = array<i64: 1, 1, 256>}, {transform_indices = @transform_10, window_bounds = array<i64: 1, 9, 256>}, {transform_indices = @transform_11, window_bounds = array<i64: 1, 1>}, {transform_indices = @transform_12, window_bounds = array<i64: 1, 1>}, {transform_indices = @transform_13, window_bounds = array<i64: 1, 1>}]} {
    %c0_i32 = arith.constant 0 : i32
    %0 = arith.cmpi eq, %arg0, %c0_i32 : i32
    %1 = arith.extui %0 : i1 to i32
    %c0_i32_0 = arith.constant 0 : i32
    %2 = arith.cmpi ne, %1, %c0_i32_0 : i32
    scf.if %2 {
      %cst_105 = arith.constant 0.000000e+00 : f32
      %c0_106 = arith.constant 0 : index
      %200 = memref.load %arg15[%c0_106] : memref<8xf32, #tpu.memory_space<smem>>
      memref.store %cst_105, %arg15[%c0_106] : memref<8xf32, #tpu.memory_space<smem>>
      %cst_107 = arith.constant 0.000000e+00 : f32
      %c1_108 = arith.constant 1 : index
      %201 = memref.load %arg15[%c1_108] : memref<8xf32, #tpu.memory_space<smem>>
      memref.store %cst_107, %arg15[%c1_108] : memref<8xf32, #tpu.memory_space<smem>>
      %cst_109 = arith.constant 0.000000e+00 : f32
      %c2_110 = arith.constant 2 : index
      %202 = memref.load %arg15[%c2_110] : memref<8xf32, #tpu.memory_space<smem>>
      memref.store %cst_109, %arg15[%c2_110] : memref<8xf32, #tpu.memory_space<smem>>
      %cst_111 = arith.constant 0.000000e+00 : f32
      %c3_112 = arith.constant 3 : index
      %203 = memref.load %arg15[%c3_112] : memref<8xf32, #tpu.memory_space<smem>>
      memref.store %cst_111, %arg15[%c3_112] : memref<8xf32, #tpu.memory_space<smem>>
      %cst_113 = arith.constant 0.000000e+00 : f32
      %c4_114 = arith.constant 4 : index
      %204 = memref.load %arg15[%c4_114] : memref<8xf32, #tpu.memory_space<smem>>
      memref.store %cst_113, %arg15[%c4_114] : memref<8xf32, #tpu.memory_space<smem>>
      %cst_115 = arith.constant 0.000000e+00 : f32
      %c5_116 = arith.constant 5 : index
      %205 = memref.load %arg15[%c5_116] : memref<8xf32, #tpu.memory_space<smem>>
      memref.store %cst_115, %arg15[%c5_116] : memref<8xf32, #tpu.memory_space<smem>>
    } else {
    }
    %c0 = arith.constant 0 : index
    %c0_1 = arith.constant 0 : index
    %c0_2 = arith.constant 0 : index
    %3 = vector.load %arg1[%c0, %c0_1, %c0_2] : memref<1x3x256xf32, #tpu.memory_space<vmem>>, vector<1x3x256xf32>
    %4 = vector.shape_cast %3 : vector<1x3x256xf32> to vector<3x256xf32>
    %cst = arith.constant 0.000000e+00 : f32
    %5 = vector.broadcast %cst : f32 to vector<32x256xf32>
    %c17_i32 = arith.constant 17 : i32
    %6 = tpu.dynamic_rotate %4 by %c17_i32 dim 1 : vector<3x256xf32>, i32 -> vector<3x256xf32>
    %c0_3 = arith.constant 0 : index
    %c0_4 = arith.constant 0 : index
    %c0_5 = arith.constant 0 : index
    %7 = vector.load %arg2[%c0_3, %c0_4, %c0_5] : memref<9x1x256xf32, #tpu.memory_space<vmem>>, vector<1x1x256xf32>
    %8 = vector.shape_cast %7 : vector<1x1x256xf32> to vector<1x256xf32>
    %9 = vector.broadcast %8 : vector<1x256xf32> to vector<3x256xf32>
    %10 = arith.mulf %6, %9 : vector<3x256xf32>
    %c0_6 = arith.constant 0 : index
    %c0_7 = arith.constant 0 : index
    %c0_8 = arith.constant 0 : index
    %11 = vector.load %arg3[%c0_6, %c0_7, %c0_8] : memref<9x32x3xbf16, #tpu.memory_space<vmem>>, vector<1x32x3xbf16>
    %12 = vector.shape_cast %11 : vector<1x32x3xbf16> to vector<32x3xbf16>
    %13 = arith.truncf %10 : vector<3x256xf32> to vector<3x256xbf16>
    %cst_9 = arith.constant dense<0.000000e+00> : vector<32x256xf32>
    %14 = tpu.matmul %12, %13, %cst_9 {dimension_numbers = #tpu.dot_dimension_numbers<[1], [0], [0], [1], [0, 0, 1, 1], [], []>} : vector<32x3xbf16>, vector<3x256xbf16>, vector<32x256xf32> -> vector<32x256xf32>
    %15 = arith.addf %5, %14 : vector<32x256xf32>
    %c16_i32 = arith.constant 16 : i32
    %16 = tpu.dynamic_rotate %4 by %c16_i32 dim 1 : vector<3x256xf32>, i32 -> vector<3x256xf32>
    %c1 = arith.constant 1 : index
    %c0_10 = arith.constant 0 : index
    %c0_11 = arith.constant 0 : index
    %17 = vector.load %arg2[%c1, %c0_10, %c0_11] : memref<9x1x256xf32, #tpu.memory_space<vmem>>, vector<1x1x256xf32>
    %18 = vector.shape_cast %17 : vector<1x1x256xf32> to vector<1x256xf32>
    %19 = vector.broadcast %18 : vector<1x256xf32> to vector<3x256xf32>
    %20 = arith.mulf %16, %19 : vector<3x256xf32>
    %c1_12 = arith.constant 1 : index
    %c0_13 = arith.constant 0 : index
    %c0_14 = arith.constant 0 : index
    %21 = vector.load %arg3[%c1_12, %c0_13, %c0_14] : memref<9x32x3xbf16, #tpu.memory_space<vmem>>, vector<1x32x3xbf16>
    %22 = vector.shape_cast %21 : vector<1x32x3xbf16> to vector<32x3xbf16>
    %23 = arith.truncf %20 : vector<3x256xf32> to vector<3x256xbf16>
    %cst_15 = arith.constant dense<0.000000e+00> : vector<32x256xf32>
    %24 = tpu.matmul %22, %23, %cst_15 {dimension_numbers = #tpu.dot_dimension_numbers<[1], [0], [0], [1], [0, 0, 1, 1], [], []>} : vector<32x3xbf16>, vector<3x256xbf16>, vector<32x256xf32> -> vector<32x256xf32>
    %25 = arith.addf %15, %24 : vector<32x256xf32>
    %c15_i32 = arith.constant 15 : i32
    %26 = tpu.dynamic_rotate %4 by %c15_i32 dim 1 : vector<3x256xf32>, i32 -> vector<3x256xf32>
    %c2 = arith.constant 2 : index
    %c0_16 = arith.constant 0 : index
    %c0_17 = arith.constant 0 : index
    %27 = vector.load %arg2[%c2, %c0_16, %c0_17] : memref<9x1x256xf32, #tpu.memory_space<vmem>>, vector<1x1x256xf32>
    %28 = vector.shape_cast %27 : vector<1x1x256xf32> to vector<1x256xf32>
    %29 = vector.broadcast %28 : vector<1x256xf32> to vector<3x256xf32>
    %30 = arith.mulf %26, %29 : vector<3x256xf32>
    %c2_18 = arith.constant 2 : index
    %c0_19 = arith.constant 0 : index
    %c0_20 = arith.constant 0 : index
    %31 = vector.load %arg3[%c2_18, %c0_19, %c0_20] : memref<9x32x3xbf16, #tpu.memory_space<vmem>>, vector<1x32x3xbf16>
    %32 = vector.shape_cast %31 : vector<1x32x3xbf16> to vector<32x3xbf16>
    %33 = arith.truncf %30 : vector<3x256xf32> to vector<3x256xbf16>
    %cst_21 = arith.constant dense<0.000000e+00> : vector<32x256xf32>
    %34 = tpu.matmul %32, %33, %cst_21 {dimension_numbers = #tpu.dot_dimension_numbers<[1], [0], [0], [1], [0, 0, 1, 1], [], []>} : vector<32x3xbf16>, vector<3x256xbf16>, vector<32x256xf32> -> vector<32x256xf32>
    %35 = arith.addf %25, %34 : vector<32x256xf32>
    %c1_i32 = arith.constant 1 : i32
    %36 = tpu.dynamic_rotate %4 by %c1_i32 dim 1 : vector<3x256xf32>, i32 -> vector<3x256xf32>
    %c3 = arith.constant 3 : index
    %c0_22 = arith.constant 0 : index
    %c0_23 = arith.constant 0 : index
    %37 = vector.load %arg2[%c3, %c0_22, %c0_23] : memref<9x1x256xf32, #tpu.memory_space<vmem>>, vector<1x1x256xf32>
    %38 = vector.shape_cast %37 : vector<1x1x256xf32> to vector<1x256xf32>
    %39 = vector.broadcast %38 : vector<1x256xf32> to vector<3x256xf32>
    %40 = arith.mulf %36, %39 : vector<3x256xf32>
    %c3_24 = arith.constant 3 : index
    %c0_25 = arith.constant 0 : index
    %c0_26 = arith.constant 0 : index
    %41 = vector.load %arg3[%c3_24, %c0_25, %c0_26] : memref<9x32x3xbf16, #tpu.memory_space<vmem>>, vector<1x32x3xbf16>
    %42 = vector.shape_cast %41 : vector<1x32x3xbf16> to vector<32x3xbf16>
    %43 = arith.truncf %40 : vector<3x256xf32> to vector<3x256xbf16>
    %cst_27 = arith.constant dense<0.000000e+00> : vector<32x256xf32>
    %44 = tpu.matmul %42, %43, %cst_27 {dimension_numbers = #tpu.dot_dimension_numbers<[1], [0], [0], [1], [0, 0, 1, 1], [], []>} : vector<32x3xbf16>, vector<3x256xbf16>, vector<32x256xf32> -> vector<32x256xf32>
    %45 = arith.addf %35, %44 : vector<32x256xf32>
    %c4 = arith.constant 4 : index
    %c0_28 = arith.constant 0 : index
    %c0_29 = arith.constant 0 : index
    %46 = vector.load %arg3[%c4, %c0_28, %c0_29] : memref<9x32x3xbf16, #tpu.memory_space<vmem>>, vector<1x32x3xbf16>
    %47 = vector.shape_cast %46 : vector<1x32x3xbf16> to vector<32x3xbf16>
    %48 = arith.truncf %4 : vector<3x256xf32> to vector<3x256xbf16>
    %cst_30 = arith.constant dense<0.000000e+00> : vector<32x256xf32>
    %49 = tpu.matmul %47, %48, %cst_30 {dimension_numbers = #tpu.dot_dimension_numbers<[1], [0], [0], [1], [0, 0, 1, 1], [], []>} : vector<32x3xbf16>, vector<3x256xbf16>, vector<32x256xf32> -> vector<32x256xf32>
    %50 = arith.addf %45, %49 : vector<32x256xf32>
    %c255_i32 = arith.constant 255 : i32
    %51 = tpu.dynamic_rotate %4 by %c255_i32 dim 1 : vector<3x256xf32>, i32 -> vector<3x256xf32>
    %c5 = arith.constant 5 : index
    %c0_31 = arith.constant 0 : index
    %c0_32 = arith.constant 0 : index
    %52 = vector.load %arg2[%c5, %c0_31, %c0_32] : memref<9x1x256xf32, #tpu.memory_space<vmem>>, vector<1x1x256xf32>
    %53 = vector.shape_cast %52 : vector<1x1x256xf32> to vector<1x256xf32>
    %54 = vector.broadcast %53 : vector<1x256xf32> to vector<3x256xf32>
    %55 = arith.mulf %51, %54 : vector<3x256xf32>
    %c5_33 = arith.constant 5 : index
    %c0_34 = arith.constant 0 : index
    %c0_35 = arith.constant 0 : index
    %56 = vector.load %arg3[%c5_33, %c0_34, %c0_35] : memref<9x32x3xbf16, #tpu.memory_space<vmem>>, vector<1x32x3xbf16>
    %57 = vector.shape_cast %56 : vector<1x32x3xbf16> to vector<32x3xbf16>
    %58 = arith.truncf %55 : vector<3x256xf32> to vector<3x256xbf16>
    %cst_36 = arith.constant dense<0.000000e+00> : vector<32x256xf32>
    %59 = tpu.matmul %57, %58, %cst_36 {dimension_numbers = #tpu.dot_dimension_numbers<[1], [0], [0], [1], [0, 0, 1, 1], [], []>} : vector<32x3xbf16>, vector<3x256xbf16>, vector<32x256xf32> -> vector<32x256xf32>
    %60 = arith.addf %50, %59 : vector<32x256xf32>
    %c241_i32 = arith.constant 241 : i32
    %61 = tpu.dynamic_rotate %4 by %c241_i32 dim 1 : vector<3x256xf32>, i32 -> vector<3x256xf32>
    %c6 = arith.constant 6 : index
    %c0_37 = arith.constant 0 : index
    %c0_38 = arith.constant 0 : index
    %62 = vector.load %arg2[%c6, %c0_37, %c0_38] : memref<9x1x256xf32, #tpu.memory_space<vmem>>, vector<1x1x256xf32>
    %63 = vector.shape_cast %62 : vector<1x1x256xf32> to vector<1x256xf32>
    %64 = vector.broadcast %63 : vector<1x256xf32> to vector<3x256xf32>
    %65 = arith.mulf %61, %64 : vector<3x256xf32>
    %c6_39 = arith.constant 6 : index
    %c0_40 = arith.constant 0 : index
    %c0_41 = arith.constant 0 : index
    %66 = vector.load %arg3[%c6_39, %c0_40, %c0_41] : memref<9x32x3xbf16, #tpu.memory_space<vmem>>, vector<1x32x3xbf16>
    %67 = vector.shape_cast %66 : vector<1x32x3xbf16> to vector<32x3xbf16>
    %68 = arith.truncf %65 : vector<3x256xf32> to vector<3x256xbf16>
    %cst_42 = arith.constant dense<0.000000e+00> : vector<32x256xf32>
    %69 = tpu.matmul %67, %68, %cst_42 {dimension_numbers = #tpu.dot_dimension_numbers<[1], [0], [0], [1], [0, 0, 1, 1], [], []>} : vector<32x3xbf16>, vector<3x256xbf16>, vector<32x256xf32> -> vector<32x256xf32>
    %70 = arith.addf %60, %69 : vector<32x256xf32>
    %c240_i32 = arith.constant 240 : i32
    %71 = tpu.dynamic_rotate %4 by %c240_i32 dim 1 : vector<3x256xf32>, i32 -> vector<3x256xf32>
    %c7 = arith.constant 7 : index
    %c0_43 = arith.constant 0 : index
    %c0_44 = arith.constant 0 : index
    %72 = vector.load %arg2[%c7, %c0_43, %c0_44] : memref<9x1x256xf32, #tpu.memory_space<vmem>>, vector<1x1x256xf32>
    %73 = vector.shape_cast %72 : vector<1x1x256xf32> to vector<1x256xf32>
    %74 = vector.broadcast %73 : vector<1x256xf32> to vector<3x256xf32>
    %75 = arith.mulf %71, %74 : vector<3x256xf32>
    %c7_45 = arith.constant 7 : index
    %c0_46 = arith.constant 0 : index
    %c0_47 = arith.constant 0 : index
    %76 = vector.load %arg3[%c7_45, %c0_46, %c0_47] : memref<9x32x3xbf16, #tpu.memory_space<vmem>>, vector<1x32x3xbf16>
    %77 = vector.shape_cast %76 : vector<1x32x3xbf16> to vector<32x3xbf16>
    %78 = arith.truncf %75 : vector<3x256xf32> to vector<3x256xbf16>
    %cst_48 = arith.constant dense<0.000000e+00> : vector<32x256xf32>
    %79 = tpu.matmul %77, %78, %cst_48 {dimension_numbers = #tpu.dot_dimension_numbers<[1], [0], [0], [1], [0, 0, 1, 1], [], []>} : vector<32x3xbf16>, vector<3x256xbf16>, vector<32x256xf32> -> vector<32x256xf32>
    %80 = arith.addf %70, %79 : vector<32x256xf32>
    %c239_i32 = arith.constant 239 : i32
    %81 = tpu.dynamic_rotate %4 by %c239_i32 dim 1 : vector<3x256xf32>, i32 -> vector<3x256xf32>
    %c8 = arith.constant 8 : index
    %c0_49 = arith.constant 0 : index
    %c0_50 = arith.constant 0 : index
    %82 = vector.load %arg2[%c8, %c0_49, %c0_50] : memref<9x1x256xf32, #tpu.memory_space<vmem>>, vector<1x1x256xf32>
    %83 = vector.shape_cast %82 : vector<1x1x256xf32> to vector<1x256xf32>
    %84 = vector.broadcast %83 : vector<1x256xf32> to vector<3x256xf32>
    %85 = arith.mulf %81, %84 : vector<3x256xf32>
    %c8_51 = arith.constant 8 : index
    %c0_52 = arith.constant 0 : index
    %c0_53 = arith.constant 0 : index
    %86 = vector.load %arg3[%c8_51, %c0_52, %c0_53] : memref<9x32x3xbf16, #tpu.memory_space<vmem>>, vector<1x32x3xbf16>
    %87 = vector.shape_cast %86 : vector<1x32x3xbf16> to vector<32x3xbf16>
    %88 = arith.truncf %85 : vector<3x256xf32> to vector<3x256xbf16>
    %cst_54 = arith.constant dense<0.000000e+00> : vector<32x256xf32>
    %89 = tpu.matmul %87, %88, %cst_54 {dimension_numbers = #tpu.dot_dimension_numbers<[1], [0], [0], [1], [0, 0, 1, 1], [], []>} : vector<32x3xbf16>, vector<3x256xbf16>, vector<32x256xf32> -> vector<32x256xf32>
    %90 = arith.addf %80, %89 : vector<32x256xf32>
    %c0_55 = arith.constant 0 : index
    %c0_56 = arith.constant 0 : index
    %91 = vector.load %arg4[%c0_55, %c0_56] : memref<32x1xf32, #tpu.memory_space<vmem>>, vector<32x1xf32>
    %92 = vector.broadcast %91 : vector<32x1xf32> to vector<32x256xf32>
    %93 = arith.addf %90, %92 : vector<32x256xf32>
    %cst_57 = arith.constant 0.000000e+00 : f32
    %94 = vector.broadcast %cst_57 : f32 to vector<32x256xf32>
    %95 = arith.maximumf %93, %94 : vector<32x256xf32>
    %c0_58 = arith.constant 0 : index
    %c0_59 = arith.constant 0 : index
    %96 = vector.load %arg5[%c0_58, %c0_59] : memref<9x32xbf16, #tpu.memory_space<vmem>>, vector<9x32xbf16>
    %97 = arith.truncf %95 : vector<32x256xf32> to vector<32x256xbf16>
    %cst_60 = arith.constant dense<0.000000e+00> : vector<9x256xf32>
    %98 = tpu.matmul %96, %97, %cst_60 {dimension_numbers = #tpu.dot_dimension_numbers<[1], [0], [0], [1], [0, 0, 1, 1], [], []>} : vector<9x32xbf16>, vector<32x256xbf16>, vector<9x256xf32> -> vector<9x256xf32>
    %c0_61 = arith.constant 0 : index
    %c0_62 = arith.constant 0 : index
    %99 = vector.load %arg6[%c0_61, %c0_62] : memref<9x1xf32, #tpu.memory_space<vmem>>, vector<9x1xf32>
    %100 = vector.broadcast %99 : vector<9x1xf32> to vector<9x256xf32>
    %101 = arith.addf %98, %100 : vector<9x256xf32>
    %c0_63 = arith.constant 0 : index
    %c0_64 = arith.constant 0 : index
    %c0_65 = arith.constant 0 : index
    %102 = vector.load %arg11[%c0_63, %c0_64, %c0_65] : memref<1x9x256xf32, #tpu.memory_space<vmem>>, vector<1x9x256xf32>
    %103 = vector.shape_cast %102 : vector<1x9x256xf32> to vector<9x256xf32>
    %104 = vector.shape_cast %101 : vector<9x256xf32> to vector<1x9x256xf32>
    tpu.vector_store %arg11[%c0_63, %c0_64, %c0_65], %104 {strides = array<i32>} : memref<1x9x256xf32, #tpu.memory_space<vmem>>, vector<1x9x256xf32>,
    %c0_66 = arith.constant 0 : index
    %c0_67 = arith.constant 0 : index
    %c0_68 = arith.constant 0 : index
    %105 = vector.load %arg7[%c0_66, %c0_67, %c0_68] : memref<1x4x256xf32, #tpu.memory_space<vmem>>, vector<1x4x256xf32>
    %106 = vector.shape_cast %105 : vector<1x4x256xf32> to vector<4x256xf32>
    %107 = vector.extract_strided_slice %101 {offsets = [0, 0], sizes = [4, 256], strides = [1, 1]} : vector<9x256xf32> to vector<4x256xf32>
    %108 = arith.negf %107 : vector<4x256xf32>
    %109 = math.exp %108 : vector<4x256xf32>
    %cst_69 = arith.constant 1.000000e+00 : f32
    %110 = vector.broadcast %cst_69 : f32 to vector<4x256xf32>
    %111 = arith.addf %110, %109 : vector<4x256xf32>
    %112 = arith.divf %110, %111 : vector<4x256xf32>
    %cst_70 = arith.constant 9.99999974E-5 : f32
    %cst_71 = arith.constant 0.999899983 : f32
    %113 = vector.broadcast %cst_70 : f32 to vector<4x256xf32>
    %114 = arith.maximumf %113, %112 : vector<4x256xf32>
    %115 = vector.broadcast %cst_71 : f32 to vector<4x256xf32>
    %116 = arith.minimumf %115, %114 : vector<4x256xf32>
    %cst_72 = arith.constant 1.000000e+00 : f32
    %117 = vector.broadcast %cst_72 : f32 to vector<4x256xf32>
    %118 = arith.cmpf oeq, %106, %117 : vector<4x256xf32>
    %119 = arith.extui %118 : vector<4x256xi1> to vector<4x256xi32>
    %120 = arith.sitofp %119 : vector<4x256xi32> to vector<4x256xf32>
    %cst_73 = arith.constant 1.000000e+00 : f32
    %121 = vector.broadcast %cst_73 : f32 to vector<4x256xf32>
    %122 = arith.subf %121, %120 : vector<4x256xf32>
    %cst_74 = arith.constant 1.000000e+00 : f32
    %123 = vector.broadcast %cst_74 : f32 to vector<4x256xf32>
    %124 = arith.subf %123, %106 : vector<4x256xf32>
    %125 = arith.mulf %124, %124 : vector<4x256xf32>
    %126 = arith.mulf %124, %124 : vector<4x256xf32>
    %127 = arith.mulf %125, %126 : vector<4x256xf32>
    %cst_75 = arith.constant 1.000000e+00 : f32
    %128 = vector.broadcast %cst_75 : f32 to vector<4x256xf32>
    %129 = arith.subf %128, %116 : vector<4x256xf32>
    %130 = math.log %116 : vector<4x256xf32>
    %131 = arith.mulf %129, %129 : vector<4x256xf32>
    %132 = arith.mulf %130, %131 : vector<4x256xf32>
    %133 = arith.mulf %132, %120 : vector<4x256xf32>
    %134 = math.log %129 : vector<4x256xf32>
    %135 = arith.mulf %116, %116 : vector<4x256xf32>
    %136 = arith.mulf %134, %135 : vector<4x256xf32>
    %137 = arith.mulf %136, %127 : vector<4x256xf32>
    %138 = arith.mulf %137, %122 : vector<4x256xf32>
    %c0_76 = arith.constant 0 : index
    %139 = memref.load %arg15[%c0_76] : memref<8xf32, #tpu.memory_space<smem>>
    %140 = vector.shape_cast %120 : vector<4x256xf32> to vector<1x4x256xf32>
    %cst_77 = arith.constant dense<0.000000e+00> : vector<1xf32>
    %141 = vector.multi_reduction <add>, %140, %cst_77 [1, 2] : vector<1x4x256xf32> to vector<1xf32>
    %142 = vector.shape_cast %141 : vector<1xf32> to vector<1x1x1xf32>
    %143 = vector.extract %142[0, 0, 0] : f32 from vector<1x1x1xf32>
    %144 = arith.addf %139, %143 : f32
    %c0_78 = arith.constant 0 : index
    %145 = memref.load %arg15[%c0_78] : memref<8xf32, #tpu.memory_space<smem>>
    memref.store %144, %arg15[%c0_78] : memref<8xf32, #tpu.memory_space<smem>>
    %c1_79 = arith.constant 1 : index
    %146 = memref.load %arg15[%c1_79] : memref<8xf32, #tpu.memory_space<smem>>
    %147 = vector.shape_cast %133 : vector<4x256xf32> to vector<1x4x256xf32>
    %cst_80 = arith.constant dense<0.000000e+00> : vector<1xf32>
    %148 = vector.multi_reduction <add>, %147, %cst_80 [1, 2] : vector<1x4x256xf32> to vector<1xf32>
    %149 = vector.shape_cast %148 : vector<1xf32> to vector<1x1x1xf32>
    %150 = vector.extract %149[0, 0, 0] : f32 from vector<1x1x1xf32>
    %151 = arith.addf %146, %150 : f32
    %c1_81 = arith.constant 1 : index
    %152 = memref.load %arg15[%c1_81] : memref<8xf32, #tpu.memory_space<smem>>
    memref.store %151, %arg15[%c1_81] : memref<8xf32, #tpu.memory_space<smem>>
    %c2_82 = arith.constant 2 : index
    %153 = memref.load %arg15[%c2_82] : memref<8xf32, #tpu.memory_space<smem>>
    %154 = vector.shape_cast %138 : vector<4x256xf32> to vector<1x4x256xf32>
    %cst_83 = arith.constant dense<0.000000e+00> : vector<1xf32>
    %155 = vector.multi_reduction <add>, %154, %cst_83 [1, 2] : vector<1x4x256xf32> to vector<1xf32>
    %156 = vector.shape_cast %155 : vector<1xf32> to vector<1x1x1xf32>
    %157 = vector.extract %156[0, 0, 0] : f32 from vector<1x1x1xf32>
    %158 = arith.addf %153, %157 : f32
    %c2_84 = arith.constant 2 : index
    %159 = memref.load %arg15[%c2_84] : memref<8xf32, #tpu.memory_space<smem>>
    memref.store %158, %arg15[%c2_84] : memref<8xf32, #tpu.memory_space<smem>>
    %c0_85 = arith.constant 0 : index
    %c0_86 = arith.constant 0 : index
    %c0_87 = arith.constant 0 : index
    %160 = vector.load %arg10[%c0_85, %c0_86, %c0_87] : memref<1x1x256xf32, #tpu.memory_space<vmem>>, vector<1x1x256xf32>
    %161 = vector.shape_cast %160 : vector<1x1x256xf32> to vector<1x256xf32>
    %c3_88 = arith.constant 3 : index
    %162 = memref.load %arg15[%c3_88] : memref<8xf32, #tpu.memory_space<smem>>
    %163 = vector.extract_strided_slice %101 {offsets = [4, 0], sizes = [2, 256], strides = [1, 1]} : vector<9x256xf32> to vector<2x256xf32>
    %c0_89 = arith.constant 0 : index
    %c0_90 = arith.constant 0 : index
    %c0_91 = arith.constant 0 : index
    %164 = vector.load %arg8[%c0_89, %c0_90, %c0_91] : memref<1x2x256xf32, #tpu.memory_space<vmem>>, vector<1x2x256xf32>
    %165 = vector.shape_cast %164 : vector<1x2x256xf32> to vector<2x256xf32>
    %166 = arith.subf %163, %165 : vector<2x256xf32>
    %167 = math.absf %166 : vector<2x256xf32>
    %168 = vector.broadcast %161 : vector<1x256xf32> to vector<2x256xf32>
    %169 = arith.mulf %167, %168 : vector<2x256xf32>
    %170 = vector.shape_cast %169 : vector<2x256xf32> to vector<1x2x256xf32>
    %cst_92 = arith.constant dense<0.000000e+00> : vector<1xf32>
    %171 = vector.multi_reduction <add>, %170, %cst_92 [1, 2] : vector<1x2x256xf32> to vector<1xf32>
    %172 = vector.shape_cast %171 : vector<1xf32> to vector<1x1x1xf32>
    %173 = vector.extract %172[0, 0, 0] : f32 from vector<1x1x1xf32>
    %174 = arith.addf %162, %173 : f32
    %c3_93 = arith.constant 3 : index
    %175 = memref.load %arg15[%c3_93] : memref<8xf32, #tpu.memory_space<smem>>
    memref.store %174, %arg15[%c3_93] : memref<8xf32, #tpu.memory_space<smem>>
    %c4_94 = arith.constant 4 : index
    %176 = memref.load %arg15[%c4_94] : memref<8xf32, #tpu.memory_space<smem>>
    %177 = vector.extract_strided_slice %101 {offsets = [6, 0], sizes = [3, 256], strides = [1, 1]} : vector<9x256xf32> to vector<3x256xf32>
    %c0_95 = arith.constant 0 : index
    %c0_96 = arith.constant 0 : index
    %c0_97 = arith.constant 0 : index
    %178 = vector.load %arg9[%c0_95, %c0_96, %c0_97] : memref<1x3x256xf32, #tpu.memory_space<vmem>>, vector<1x3x256xf32>
    %179 = vector.shape_cast %178 : vector<1x3x256xf32> to vector<3x256xf32>
    %180 = arith.subf %177, %179 : vector<3x256xf32>
    %181 = math.absf %180 : vector<3x256xf32>
    %182 = vector.broadcast %161 : vector<1x256xf32> to vector<3x256xf32>
    %183 = arith.mulf %181, %182 : vector<3x256xf32>
    %184 = vector.shape_cast %183 : vector<3x256xf32> to vector<1x3x256xf32>
    %cst_98 = arith.constant dense<0.000000e+00> : vector<1xf32>
    %185 = vector.multi_reduction <add>, %184, %cst_98 [1, 2] : vector<1x3x256xf32> to vector<1xf32>
    %186 = vector.shape_cast %185 : vector<1xf32> to vector<1x1x1xf32>
    %187 = vector.extract %186[0, 0, 0] : f32 from vector<1x1x1xf32>
    %188 = arith.addf %176, %187 : f32
    %c4_99 = arith.constant 4 : index
    %189 = memref.load %arg15[%c4_99] : memref<8xf32, #tpu.memory_space<smem>>
    memref.store %188, %arg15[%c4_99] : memref<8xf32, #tpu.memory_space<smem>>
    %c5_100 = arith.constant 5 : index
    %190 = memref.load %arg15[%c5_100] : memref<8xf32, #tpu.memory_space<smem>>
    %191 = vector.shape_cast %161 : vector<1x256xf32> to vector<1x1x256xf32>
    %cst_101 = arith.constant dense<0.000000e+00> : vector<1xf32>
    %192 = vector.multi_reduction <add>, %191, %cst_101 [1, 2] : vector<1x1x256xf32> to vector<1xf32>
    %193 = vector.shape_cast %192 : vector<1xf32> to vector<1x1x1xf32>
    %194 = vector.extract %193[0, 0, 0] : f32 from vector<1x1x1xf32>
    %195 = arith.addf %190, %194 : f32
    %c5_102 = arith.constant 5 : index
    %196 = memref.load %arg15[%c5_102] : memref<8xf32, #tpu.memory_space<smem>>
    memref.store %195, %arg15[%c5_102] : memref<8xf32, #tpu.memory_space<smem>>
    %c1_i32_103 = arith.constant 1 : i32
    %197 = arith.cmpi eq, %arg0, %c1_i32_103 : i32
    %198 = arith.extui %197 : i1 to i32
    %c0_i32_104 = arith.constant 0 : i32
    %199 = arith.cmpi ne, %198, %c0_i32_104 : i32
    scf.if %199 {
      %c0_105 = arith.constant 0 : index
      %200 = memref.load %arg15[%c0_105] : memref<8xf32, #tpu.memory_space<smem>>
      %c1_106 = arith.constant 1 : index
      %201 = memref.load %arg15[%c1_106] : memref<8xf32, #tpu.memory_space<smem>>
      %c2_107 = arith.constant 2 : index
      %202 = memref.load %arg15[%c2_107] : memref<8xf32, #tpu.memory_space<smem>>
      %cst_108 = arith.constant 0.000000e+00 : f32
      %203 = arith.cmpf ogt, %200, %cst_108 : f32
      %204 = arith.addf %201, %202 : f32
      %cst_109 = arith.constant 0.000000e+00 : f32
      %205 = arith.subf %cst_109, %204 : f32
      %cst_110 = arith.constant 1.000000e+00 : f32
      %206 = arith.maximumf %200, %cst_110 : f32
      %207 = arith.divf %205, %206 : f32
      %cst_111 = arith.constant 0.000000e+00 : f32
      %208 = arith.subf %cst_111, %202 : f32
      %209 = arith.select %203, %207, %208 : f32
      %c0_112 = arith.constant 0 : index
      %c0_113 = arith.constant 0 : index
      %210 = memref.load %arg12[%c0_112, %c0_113] : memref<1x1xf32, #tpu.memory_space<smem>>
      memref.store %209, %arg12[%c0_112, %c0_113] : memref<1x1xf32, #tpu.memory_space<smem>>
      %c5_114 = arith.constant 5 : index
      %211 = memref.load %arg15[%c5_114] : memref<8xf32, #tpu.memory_space<smem>>
      %cst_115 = arith.constant 9.99999974E-5 : f32
      %212 = arith.addf %211, %cst_115 : f32
      %c3_116 = arith.constant 3 : index
      %213 = memref.load %arg15[%c3_116] : memref<8xf32, #tpu.memory_space<smem>>
      %214 = arith.divf %213, %212 : f32
      %c0_117 = arith.constant 0 : index
      %c0_118 = arith.constant 0 : index
      %215 = memref.load %arg13[%c0_117, %c0_118] : memref<1x1xf32, #tpu.memory_space<smem>>
      memref.store %214, %arg13[%c0_117, %c0_118] : memref<1x1xf32, #tpu.memory_space<smem>>
      %c4_119 = arith.constant 4 : index
      %216 = memref.load %arg15[%c4_119] : memref<8xf32, #tpu.memory_space<smem>>
      %217 = arith.divf %216, %212 : f32
      %c0_120 = arith.constant 0 : index
      %c0_121 = arith.constant 0 : index
      %218 = memref.load %arg14[%c0_120, %c0_121] : memref<1x1xf32, #tpu.memory_space<smem>>
      memref.store %217, %arg14[%c0_120, %c0_121] : memref<1x1xf32, #tpu.memory_space<smem>>
    } else {
    }
    return
  }
  func.func @transform_0(%arg0: i32) -> (i32, i32, i32) {
    %c0_i32 = arith.constant 0 : i32
    %c0_i32_0 = arith.constant 0 : i32
    %c0_i32_1 = arith.constant 0 : i32
    return %arg0, %c0_i32, %c0_i32_0 : i32, i32, i32
  }
  func.func @transform_1(%arg0: i32) -> (i32, i32, i32) {
    %c0_i32 = arith.constant 0 : i32
    %c0_i32_0 = arith.constant 0 : i32
    %c0_i32_1 = arith.constant 0 : i32
    %c0_i32_2 = arith.constant 0 : i32
    return %c0_i32, %c0_i32_0, %c0_i32_1 : i32, i32, i32
  }
  func.func @transform_2(%arg0: i32) -> (i32, i32, i32) {
    %c0_i32 = arith.constant 0 : i32
    %c0_i32_0 = arith.constant 0 : i32
    %c0_i32_1 = arith.constant 0 : i32
    %c0_i32_2 = arith.constant 0 : i32
    return %c0_i32, %c0_i32_0, %c0_i32_1 : i32, i32, i32
  }
  func.func @transform_3(%arg0: i32) -> (i32, i32) {
    %c0_i32 = arith.constant 0 : i32
    %c0_i32_0 = arith.constant 0 : i32
    %c0_i32_1 = arith.constant 0 : i32
    return %c0_i32, %c0_i32_0 : i32, i32
  }
  func.func @transform_4(%arg0: i32) -> (i32, i32) {
    %c0_i32 = arith.constant 0 : i32
    %c0_i32_0 = arith.constant 0 : i32
    %c0_i32_1 = arith.constant 0 : i32
    return %c0_i32, %c0_i32_0 : i32, i32
  }
  func.func @transform_5(%arg0: i32) -> (i32, i32) {
    %c0_i32 = arith.constant 0 : i32
    %c0_i32_0 = arith.constant 0 : i32
    %c0_i32_1 = arith.constant 0 : i32
    return %c0_i32, %c0_i32_0 : i32, i32
  }
  func.func @transform_6(%arg0: i32) -> (i32, i32, i32) {
    %c0_i32 = arith.constant 0 : i32
    %c0_i32_0 = arith.constant 0 : i32
    %c0_i32_1 = arith.constant 0 : i32
    return %arg0, %c0_i32, %c0_i32_0 : i32, i32, i32
  }
  func.func @transform_7(%arg0: i32) -> (i32, i32, i32) {
    %c0_i32 = arith.constant 0 : i32
    %c0_i32_0 = arith.constant 0 : i32
    %c0_i32_1 = arith.constant 0 : i32
    return %arg0, %c0_i32, %c0_i32_0 : i32, i32, i32
  }
  func.func @transform_8(%arg0: i32) -> (i32, i32, i32) {
    %c0_i32 = arith.constant 0 : i32
    %c0_i32_0 = arith.constant 0 : i32
    %c0_i32_1 = arith.constant 0 : i32
    return %arg0, %c0_i32, %c0_i32_0 : i32, i32, i32
  }
  func.func @transform_9(%arg0: i32) -> (i32, i32, i32) {
    %c0_i32 = arith.constant 0 : i32
    %c0_i32_0 = arith.constant 0 : i32
    %c0_i32_1 = arith.constant 0 : i32
    return %arg0, %c0_i32, %c0_i32_0 : i32, i32, i32
  }
  func.func @transform_10(%arg0: i32) -> (i32, i32, i32) {
    %c0_i32 = arith.constant 0 : i32
    %c0_i32_0 = arith.constant 0 : i32
    %c0_i32_1 = arith.constant 0 : i32
    return %arg0, %c0_i32, %c0_i32_0 : i32, i32, i32
  }
  func.func @transform_11(%arg0: i32) -> (i32, i32) {
    %c0_i32 = arith.constant 0 : i32
    %c0_i32_0 = arith.constant 0 : i32
    %c0_i32_1 = arith.constant 0 : i32
    return %c0_i32, %c0_i32_0 : i32, i32
  }
  func.func @transform_12(%arg0: i32) -> (i32, i32) {
    %c0_i32 = arith.constant 0 : i32
    %c0_i32_0 = arith.constant 0 : i32
    %c0_i32_1 = arith.constant 0 : i32
    return %c0_i32, %c0_i32_0 : i32, i32
  }
  func.func @transform_13(%arg0: i32) -> (i32, i32) {
    %c0_i32 = arith.constant 0 : i32
    %c0_i32_0 = arith.constant 0 : i32
    %c0_i32_1 = arith.constant 0 : i32
    return %c0_i32, %c0_i32_0 : i32, i32
  }
}

</mosaic_0001>

<llo_original>
// kernel: _forward_train.1
$region0: #{_forward_train.1}
  #allocation0 [shape = 'u32[]', space=smem, size = 0x4, offset = 0x4, fixed_abs, tag = 'smem constant byte address 0x4 - core index']
  #allocation1 [shape = 'u32[72,128]{1,0:T(1,128)}', space=vmem, size = 0x9000, scoped, tag = 'internal scratch']
  #allocation2 [shape = 'f32[8]{0:T(128)}', space=smem, size = 0x200, scoped, tag = 'scratch operand']
  %s0 = inlined_call_operand.vmem [shape: f32[2,3,256], index: 0, kind: input, shape index: {}]
  %s1 = inlined_call_operand.vmem [shape: f32[9,1,256], index: 1, kind: input, shape index: {}]
  %s2 = inlined_call_operand.vmem [shape: bf16[9,32,3], index: 2, kind: input, shape index: {}]
  %s3 = inlined_call_operand.vmem [shape: f32[32,1], index: 3, kind: input, shape index: {}]
  %s4 = inlined_call_operand.vmem [shape: bf16[9,32], index: 4, kind: input, shape index: {}]
  %s5 = inlined_call_operand.vmem [shape: f32[9,1], index: 5, kind: input, shape index: {}]
  %s6 = inlined_call_operand.vmem [shape: f32[2,4,256], index: 6, kind: input, shape index: {}]
  %s7 = inlined_call_operand.vmem [shape: f32[2,2,256], index: 7, kind: input, shape index: {}]
  %s8 = inlined_call_operand.vmem [shape: f32[2,3,256], index: 8, kind: input, shape index: {}]
  %s9 = inlined_call_operand.vmem [shape: f32[2,1,256], index: 9, kind: input, shape index: {}]
  %s10 = inlined_call_operand.vmem [shape: f32[2,9,256], index: 10, kind: output, shape index: {0}]
  %s11 = inlined_call_operand.hbm [shape: f32[1,1], index: 11, kind: output, shape index: {1}]
  %s12 = inlined_call_operand.hbm [shape: f32[1,1], index: 12, kind: output, shape index: {2}]
  %s13 = inlined_call_operand.hbm [shape: f32[1,1], index: 13, kind: output, shape index: {3}]
  %14 = xla_tuple %s10, %s11, %s12, %s13
  %s15 = sld [smem:[#allocation0]]
  $region105: #{_forward_train.1} parent=0
    _
  %s17 = ssub.s32 1, %s15
  %s18 = scalar_select 0, %s17, %s15
  $region1: #{_forward_train.1} parent=0
    #allocation3 [shape = 'u8[512]{0}', space=smem, size = 0x200, scoped, tag = 'output window, operand 1, single buffered']
    #allocation4 [shape = 's32[2]{0}', space=sflag, size = 0x8, scoped, tag = 'scoped memory for _forward_train.1']
    #allocation5 [shape = 'u8[512]{0}', space=smem, size = 0x200, scoped, tag = 'output window, operand 2, single buffered']
    #allocation6 [shape = 's32[1]{0}', space=sflag, size = 0x4, scoped, tag = 'scoped memory for _forward_train.1']
    #allocation7 [shape = 'u8[512]{0}', space=smem, size = 0x200, scoped, tag = 'output window, operand 3, single buffered']
    %19 = vsyncpa [#allocation4], 0
    %20 = vsyncpa [#allocation6], 0
    loop: start=0, step=1, limit=4
    $region2: #{_forward_train.1} parent=1 // loop_pre_header
      _
    $region3: #{_forward_train.1} parent=1 // loop_header
      %s22 = sphi 0, %s26
      %p23 = scmp.ge.s32.totalorder %s22, 4
      %s32 = sphi 0, %s34
      %s35 = sphi 0, %s32
      %s36 = sphi 0, %s35
      %s52 = sphi 0, %s36
      %s56 = sphi 0, %s56
      %s58 = sphi 0, %s56
      %s59 = sphi 0, %s58
      %s73 = sphi 0, %s59
      %s77 = sphi 0, %s77
      %s79 = sphi 0, %s77
      %s80 = sphi 0, %s79
      %s94 = sphi 0, %s80
      %s98 = sphi 0, %s98
      %s100 = sphi 0, %s98
      %s101 = sphi 0, %s100
      %s115 = sphi 0, %s101
      %s119 = sphi 0, %s119
      %s121 = sphi 0, %s119
      %s122 = sphi 0, %s121
      %s136 = sphi 0, %s122
      %s140 = sphi 0, %s140
      %s142 = sphi 0, %s140
      %s143 = sphi 0, %s142
      %s157 = sphi 0, %s143
      %s163 = sphi 0, %s165
      %s166 = sphi 0, %s163
      %s167 = sphi 0, %s166
      %s183 = sphi 0, %s167
      %s189 = sphi 0, %s191
      %s192 = sphi 0, %s189
      %s193 = sphi 0, %s192
      %s209 = sphi 0, %s193
      %s215 = sphi 0, %s217
      %s218 = sphi 0, %s215
      %s219 = sphi 0, %s218
      %s235 = sphi 0, %s219
      %s241 = sphi 0, %s243
      %s244 = sphi 0, %s241
      %s245 = sphi 0, %s244
      %s261 = sphi 0, %s245
      %s267 = sphi 0, %s269
      %s270 = sphi 0, %s267
      %s271 = sphi 0, %s270
      %s287 = sphi 0, %s271
      %s291 = sphi 0, %s291
      %s293 = sphi 0, %s291
      %s294 = sphi 0, %s293
      %s308 = sphi 0, %s294
      %s312 = sphi 0, %s312
      %s314 = sphi 0, %s312
      %s315 = sphi 0, %s314
      %s329 = sphi 0, %s315
      %s333 = sphi 0, %s333
      %s335 = sphi 0, %s333
      %s336 = sphi 0, %s335
      %s350 = sphi 0, %s336
    $region4: #{_forward_train.1} parent=1 // loop_header_branch
      %25 = sbr.rel (%p23) target = $region8
    $region5: #{_forward_train.1} parent=1 // loop_body
      %s27 = ssub.s32 %s22, 1
      %s28 = ssub.s32 %s22, 2
      %s29 = sadd.s32 %s22, 1
      %s30 = ssub.s32 %s22, %s29
      %p31 = scmp.eq.s32.totalorder %s30, 0
      %s33 = sadd.s32 %s32, 1
      %s34 = scalar_select %p31, %s32, %s33
      %p37 = pneg %p31
      %p38 = scmp.eq.s32.totalorder %s22, 1
      %p39 = por %p37, %p38
      %p40 = scmp.ne.s32.totalorder %s32, %s35
      %p41 = scmp.eq.s32.totalorder %s22, 0
      %p42 = por %p40, %p41
      %p43 = scmp.ne.s32.totalorder %s32, %s35
      %p44 = scmp.eq.s32.totalorder %s27, 1
      %p45 = por %p43, %p44
      %p46 = scmp.ne.s32.totalorder %s35, %s36
      %p47 = scmp.eq.s32.totalorder %s27, 0
      %p48 = por %p46, %p47
      %p49 = scmp.ne.s32.totalorder %s35, %s36
      %p50 = scmp.eq.s32.totalorder %s28, 1
      %p51 = por %p49, %p50
      %p53 = scmp.ne.s32.totalorder %s36, %s52
      %p54 = scmp.eq.s32.totalorder %s28, 0
      %p55 = por %p53, %p54
      %s57 = sadd.s32 %s56, 1
      %p60 = scmp.eq.s32.totalorder %s22, 1
      %p61 = scmp.ne.s32.totalorder %s56, %s58
      %p62 = scmp.eq.s32.totalorder %s22, 0
      %p63 = por %p61, %p62
      %p64 = scmp.ne.s32.totalorder %s56, %s58
      %p65 = scmp.eq.s32.totalorder %s27, 1
      %p66 = por %p64, %p65
      %p67 = scmp.ne.s32.totalorder %s58, %s59
      %p68 = scmp.eq.s32.totalorder %s27, 0
      %p69 = por %p67, %p68
      %p70 = scmp.ne.s32.totalorder %s58, %s59
      %p71 = scmp.eq.s32.totalorder %s28, 1
      %p72 = por %p70, %p71
      %p74 = scmp.ne.s32.totalorder %s59, %s73
      %p75 = scmp.eq.s32.totalorder %s28, 0
      %p76 = por %p74, %p75
      %s78 = sadd.s32 %s77, 1
      %p81 = scmp.eq.s32.totalorder %s22, 1
      %p82 = scmp.ne.s32.totalorder %s77, %s79
      %p83 = scmp.eq.s32.totalorder %s22, 0
      %p84 = por %p82, %p83
      %p85 = scmp.ne.s32.totalorder %s77, %s79
      %p86 = scmp.eq.s32.totalorder %s27, 1
      %p87 = por %p85, %p86
      %p88 = scmp.ne.s32.totalorder %s79, %s80
      %p89 = scmp.eq.s32.totalorder %s27, 0
      %p90 = por %p88, %p89
      %p91 = scmp.ne.s32.totalorder %s79, %s80
      %p92 = scmp.eq.s32.totalorder %s28, 1
      %p93 = por %p91, %p92
      %p95 = scmp.ne.s32.totalorder %s80, %s94
      %p96 = scmp.eq.s32.totalorder %s28, 0
      %p97 = por %p95, %p96
      %s99 = sadd.s32 %s98, 1
      %p102 = scmp.eq.s32.totalorder %s22, 1
      %p103 = scmp.ne.s32.totalorder %s98, %s100
      %p104 = scmp.eq.s32.totalorder %s22, 0
      %p105 = por %p103, %p104
      %p106 = scmp.ne.s32.totalorder %s98, %s100
      %p107 = scmp.eq.s32.totalorder %s27, 1
      %p108 = por %p106, %p107
      %p109 = scmp.ne.s32.totalorder %s100, %s101
      %p110 = scmp.eq.s32.totalorder %s27, 0
      %p111 = por %p109, %p110
      %p112 = scmp.ne.s32.totalorder %s100, %s101
      %p113 = scmp.eq.s32.totalorder %s28, 1
      %p114 = por %p112, %p113
      %p116 = scmp.ne.s32.totalorder %s101, %s115
      %p117 = scmp.eq.s32.totalorder %s28, 0
      %p118 = por %p116, %p117
      %s120 = sadd.s32 %s119, 1
      %p123 = scmp.eq.s32.totalorder %s22, 1
      %p124 = scmp.ne.s32.totalorder %s119, %s121
      %p125 = scmp.eq.s32.totalorder %s22, 0
      %p126 = por %p124, %p125
      %p127 = scmp.ne.s32.totalorder %s119, %s121
      %p128 = scmp.eq.s32.totalorder %s27, 1
      %p129 = por %p127, %p128
      %p130 = scmp.ne.s32.totalorder %s121, %s122
      %p131 = scmp.eq.s32.totalorder %s27, 0
      %p132 = por %p130, %p131
      %p133 = scmp.ne.s32.totalorder %s121, %s122
      %p134 = scmp.eq.s32.totalorder %s28, 1
      %p135 = por %p133, %p134
      %p137 = scmp.ne.s32.totalorder %s122, %s136
      %p138 = scmp.eq.s32.totalorder %s28, 0
      %p139 = por %p137, %p138
      %s141 = sadd.s32 %s140, 1
      %p144 = scmp.eq.s32.totalorder %s22, 1
      %p145 = scmp.ne.s32.totalorder %s140, %s142
      %p146 = scmp.eq.s32.totalorder %s22, 0
      %p147 = por %p145, %p146
      %p148 = scmp.ne.s32.totalorder %s140, %s142
      %p149 = scmp.eq.s32.totalorder %s27, 1
      %p150 = por %p148, %p149
      %p151 = scmp.ne.s32.totalorder %s142, %s143
      %p152 = scmp.eq.s32.totalorder %s27, 0
      %p153 = por %p151, %p152
      %p154 = scmp.ne.s32.totalorder %s142, %s143
      %p155 = scmp.eq.s32.totalorder %s28, 1
      %p156 = por %p154, %p155
      %p158 = scmp.ne.s32.totalorder %s143, %s157
      %p159 = scmp.eq.s32.totalorder %s28, 0
      %p160 = por %p158, %p159
      %s161 = ssub.s32 %s22, %s29
      %p162 = scmp.eq.s32.totalorder %s161, 0
      %s164 = sadd.s32 %s163, 1
      %s165 = scalar_select %p162, %s163, %s164
      %p168 = pneg %p162
      %p169 = scmp.eq.s32.totalorder %s22, 1
      %p170 = por %p168, %p169
      %p171 = scmp.ne.s32.totalorder %s163, %s166
      %p172 = scmp.eq.s32.totalorder %s22, 0
      %p173 = por %p171, %p172
      %p174 = scmp.ne.s32.totalorder %s163, %s166
      %p175 = scmp.eq.s32.totalorder %s27, 1
      %p176 = por %p174, %p175
      %p177 = scmp.ne.s32.totalorder %s166, %s167
      %p178 = scmp.eq.s32.totalorder %s27, 0
      %p179 = por %p177, %p178
      %p180 = scmp.ne.s32.totalorder %s166, %s167
      %p181 = scmp.eq.s32.totalorder %s28, 1
      %p182 = por %p180, %p181
      %p184 = scmp.ne.s32.totalorder %s167, %s183
      %p185 = scmp.eq.s32.totalorder %s28, 0
      %p186 = por %p184, %p185
      %s187 = ssub.s32 %s22, %s29
      %p188 = scmp.eq.s32.totalorder %s187, 0
      %s190 = sadd.s32 %s189, 1
      %s191 = scalar_select %p188, %s189, %s190
      %p194 = pneg %p188
      %p195 = scmp.eq.s32.totalorder %s22, 1
      %p196 = por %p194, %p195
      %p197 = scmp.ne.s32.totalorder %s189, %s192
      %p198 = scmp.eq.s32.totalorder %s22, 0
      %p199 = por %p197, %p198
      %p200 = scmp.ne.s32.totalorder %s189, %s192
      %p201 = scmp.eq.s32.totalorder %s27, 1
      %p202 = por %p200, %p201
      %p203 = scmp.ne.s32.totalorder %s192, %s193
      %p204 = scmp.eq.s32.totalorder %s27, 0
      %p205 = por %p203, %p204
      %p206 = scmp.ne.s32.totalorder %s192, %s193
      %p207 = scmp.eq.s32.totalorder %s28, 1
      %p208 = por %p206, %p207
      %p210 = scmp.ne.s32.totalorder %s193, %s209
      %p211 = scmp.eq.s32.totalorder %s28, 0
      %p212 = por %p210, %p211
      %s213 = ssub.s32 %s22, %s29
      %p214 = scmp.eq.s32.totalorder %s213, 0
      %s216 = sadd.s32 %s215, 1
      %s217 = scalar_select %p214, %s215, %s216
      %p220 = pneg %p214
      %p221 = scmp.eq.s32.totalorder %s22, 1
      %p222 = por %p220, %p221
      %p223 = scmp.ne.s32.totalorder %s215, %s218
      %p224 = scmp.eq.s32.totalorder %s22, 0
      %p225 = por %p223, %p224
      %p226 = scmp.ne.s32.totalorder %s215, %s218
      %p227 = scmp.eq.s32.totalorder %s27, 1
      %p228 = por %p226, %p227
      %p229 = scmp.ne.s32.totalorder %s218, %s219
      %p230 = scmp.eq.s32.totalorder %s27, 0
      %p231 = por %p229, %p230
      %p232 = scmp.ne.s32.totalorder %s218, %s219
      %p233 = scmp.eq.s32.totalorder %s28, 1
      %p234 = por %p232, %p233
      %p236 = scmp.ne.s32.totalorder %s219, %s235
      %p237 = scmp.eq.s32.totalorder %s28, 0
      %p238 = por %p236, %p237
      %s239 = ssub.s32 %s22, %s29
      %p240 = scmp.eq.s32.totalorder %s239, 0
      %s242 = sadd.s32 %s241, 1
      %s243 = scalar_select %p240, %s241, %s242
      %p246 = pneg %p240
      %p247 = scmp.eq.s32.totalorder %s22, 1
      %p248 = por %p246, %p247
      %p249 = scmp.ne.s32.totalorder %s241, %s244
      %p250 = scmp.eq.s32.totalorder %s22, 0
      %p251 = por %p249, %p250
      %p252 = scmp.ne.s32.totalorder %s241, %s244
      %p253 = scmp.eq.s32.totalorder %s27, 1
      %p254 = por %p252, %p253
      %p255 = scmp.ne.s32.totalorder %s244, %s245
      %p256 = scmp.eq.s32.totalorder %s27, 0
      %p257 = por %p255, %p256
      %p258 = scmp.ne.s32.totalorder %s244, %s245
      %p259 = scmp.eq.s32.totalorder %s28, 1
      %p260 = por %p258, %p259
      %p262 = scmp.ne.s32.totalorder %s245, %s261
      %p263 = scmp.eq.s32.totalorder %s28, 0
      %p264 = por %p262, %p263
      %s265 = ssub.s32 %s22, %s29
      %p266 = scmp.eq.s32.totalorder %s265, 0
      %s268 = sadd.s32 %s267, 1
      %s269 = scalar_select %p266, %s267, %s268
      %p272 = pneg %p266
      %p273 = scmp.eq.s32.totalorder %s22, 1
      %p274 = por %p272, %p273
      %p275 = scmp.ne.s32.totalorder %s267, %s270
      %p276 = scmp.eq.s32.totalorder %s22, 0
      %p277 = por %p275, %p276
      %p278 = scmp.ne.s32.totalorder %s267, %s270
      %p279 = scmp.eq.s32.totalorder %s27, 1
      %p280 = por %p278, %p279
      %p281 = scmp.ne.s32.totalorder %s270, %s271
      %p282 = scmp.eq.s32.totalorder %s27, 0
      %p283 = por %p281, %p282
      %p284 = scmp.ne.s32.totalorder %s270, %s271
      %p285 = scmp.eq.s32.totalorder %s28, 1
      %p286 = por %p284, %p285
      %p288 = scmp.ne.s32.totalorder %s271, %s287
      %p289 = scmp.eq.s32.totalorder %s28, 0
      %p290 = por %p288, %p289
      %s292 = sadd.s32 %s291, 1
      %p295 = scmp.eq.s32.totalorder %s22, 1
      %p296 = scmp.ne.s32.totalorder %s291, %s293
      %p297 = scmp.eq.s32.totalorder %s22, 0
      %p298 = por %p296, %p297
      %p299 = scmp.ne.s32.totalorder %s291, %s293
      %p300 = scmp.eq.s32.totalorder %s27, 1
      %p301 = por %p299, %p300
      %p302 = scmp.ne.s32.totalorder %s293, %s294
      %p303 = scmp.eq.s32.totalorder %s27, 0
      %p304 = por %p302, %p303
      %p305 = scmp.ne.s32.totalorder %s293, %s294
      %p306 = scmp.eq.s32.totalorder %s28, 1
      %p307 = por %p305, %p306
      %p309 = scmp.ne.s32.totalorder %s294, %s308
      %p310 = scmp.eq.s32.totalorder %s28, 0
      %p311 = por %p309, %p310
      %s313 = sadd.s32 %s312, 1
      %p316 = scmp.eq.s32.totalorder %s22, 1
      %p317 = scmp.ne.s32.totalorder %s312, %s314
      %p318 = scmp.eq.s32.totalorder %s22, 0
      %p319 = por %p317, %p318
      %p320 = scmp.ne.s32.totalorder %s312, %s314
      %p321 = scmp.eq.s32.totalorder %s27, 1
      %p322 = por %p320, %p321
      %p323 = scmp.ne.s32.totalorder %s314, %s315
      %p324 = scmp.eq.s32.totalorder %s27, 0
      %p325 = por %p323, %p324
      %p326 = scmp.ne.s32.totalorder %s314, %s315
      %p327 = scmp.eq.s32.totalorder %s28, 1
      %p328 = por %p326, %p327
      %p330 = scmp.ne.s32.totalorder %s315, %s329
      %p331 = scmp.eq.s32.totalorder %s28, 0
      %p332 = por %p330, %p331
      %s334 = sadd.s32 %s333, 1
      %p337 = scmp.eq.s32.totalorder %s22, 1
      %p338 = scmp.ne.s32.totalorder %s333, %s335
      %p339 = scmp.eq.s32.totalorder %s22, 0
      %p340 = por %p338, %p339
      %p341 = scmp.ne.s32.totalorder %s333, %s335
      %p342 = scmp.eq.s32.totalorder %s27, 1
      %p343 = por %p341, %p342
      %p344 = scmp.ne.s32.totalorder %s335, %s336
      %p345 = scmp.eq.s32.totalorder %s27, 0
      %p346 = por %p344, %p345
      %p347 = scmp.ne.s32.totalorder %s335, %s336
      %p348 = scmp.eq.s32.totalorder %s28, 1
      %p349 = por %p347, %p348
      %p351 = scmp.ne.s32.totalorder %s336, %s350
      %p352 = scmp.eq.s32.totalorder %s28, 0
      %p353 = por %p351, %p352
      %p354 = scmp.le.s32.totalorder 1, %s22
      %p355 = scmp.lt.s32.totalorder %s22, 3
      %p356 = pnand %p354, %p355
      %p357 = pneg %p356
      // Predicated region
      $region9: #{_forward_train.1} parent=5 // pred_check
        _
      $region10: #{_forward_train.1} parent=5 // pred_check_branch
        %359 = sbr.rel (%p356) target = $region12
      $region11: #{_forward_train.1} parent=5 // pred_region
        %s360 = ssub.s32 %s22, 1
        // Predicated region
        $region13: #{_forward_train.1} parent=11 // pred_check
          %p361 = pneg %p69
        $region14: #{_forward_train.1} parent=11 // pred_check_branch
          %363 = sbr.rel (%p361) target = $region16
        $region15: #{_forward_train.1} parent=11 // pred_region
          _
        $region16: #{_forward_train.1} parent=11 // pred_fallthru
          _
        // Predicated region
        $region17: #{_forward_train.1} parent=11 // pred_check
          %p364 = pneg %p90
        $region18: #{_forward_train.1} parent=11 // pred_check_branch
          %366 = sbr.rel (%p364) target = $region20
        $region19: #{_forward_train.1} parent=11 // pred_region
          _
        $region20: #{_forward_train.1} parent=11 // pred_fallthru
          _
        // Predicated region
        $region21: #{_forward_train.1} parent=11 // pred_check
          %p367 = pneg %p111
        $region22: #{_forward_train.1} parent=11 // pred_check_branch
          %369 = sbr.rel (%p367) target = $region24
        $region23: #{_forward_train.1} parent=11 // pred_region
          _
        $region24: #{_forward_train.1} parent=11 // pred_fallthru
          _
        // Predicated region
        $region25: #{_forward_train.1} parent=11 // pred_check
          %p370 = pneg %p132
        $region26: #{_forward_train.1} parent=11 // pred_check_branch
          %372 = sbr.rel (%p370) target = $region28
        $region27: #{_forward_train.1} parent=11 // pred_region
          _
        $region28: #{_forward_train.1} parent=11 // pred_fallthru
          _
        // Predicated region
        $region29: #{_forward_train.1} parent=11 // pred_check
          %p373 = pneg %p153
        $region30: #{_forward_train.1} parent=11 // pred_check_branch
          %375 = sbr.rel (%p373) target = $region32
        $region31: #{_forward_train.1} parent=11 // pred_region
          _
        $region32: #{_forward_train.1} parent=11 // pred_fallthru
          _
      $region12: #{_forward_train.1} parent=5 // pred_fallthru
        _
      %p376 = scmp.lt.s32.totalorder %s22, 2
      // Predicated region
      $region33: #{_forward_train.1} parent=5 // pred_check
        %p377 = pneg %p376
      $region34: #{_forward_train.1} parent=5 // pred_check_branch
        %379 = sbr.rel (%p377) target = $region36
      $region35: #{_forward_train.1} parent=5 // pred_region
        // Predicated region
        $region37: #{_forward_train.1} parent=35 // pred_check
          %p380 = pneg %p42
        $region38: #{_forward_train.1} parent=35 // pred_check_branch
          %382 = sbr.rel (%p380) target = $region40
        $region39: #{_forward_train.1} parent=35 // pred_region
          %p383 = scmp.lt.s32.totalorder %s22, 1
          %s384 = scalar_select %p383, %s22, 1
          %s385 = smul.addr %s384, 2
          %s386 = smul.addr %s385, 4
          %s387 = scalar_lea.vmem %s0, %s386
        $region40: #{_forward_train.1} parent=35 // pred_fallthru
          _
        // Predicated region
        $region41: #{_forward_train.1} parent=35 // pred_check
          %p388 = pneg %p173
        $region42: #{_forward_train.1} parent=35 // pred_check_branch
          %390 = sbr.rel (%p388) target = $region44
        $region43: #{_forward_train.1} parent=35 // pred_region
          %p391 = scmp.lt.s32.totalorder %s22, 1
          %s392 = scalar_select %p391, %s22, 1
          %s393 = smul.addr %s392, 2
          %s394 = smul.addr %s393, 4
          %s395 = scalar_lea.vmem %s6, %s394
        $region44: #{_forward_train.1} parent=35 // pred_fallthru
          _
        // Predicated region
        $region45: #{_forward_train.1} parent=35 // pred_check
          %p396 = pneg %p199
        $region46: #{_forward_train.1} parent=35 // pred_check_branch
          %398 = sbr.rel (%p396) target = $region48
        $region47: #{_forward_train.1} parent=35 // pred_region
          %p399 = scmp.lt.s32.totalorder %s22, 1
          %s400 = scalar_select %p399, %s22, 1
          %s401 = smul.addr %s400, 2
          %s402 = smul.addr %s401, 2
          %s403 = scalar_lea.vmem %s7, %s402
        $region48: #{_forward_train.1} parent=35 // pred_fallthru
          _
        // Predicated region
        $region49: #{_forward_train.1} parent=35 // pred_check
          %p404 = pneg %p225
        $region50: #{_forward_train.1} parent=35 // pred_check_branch
          %406 = sbr.rel (%p404) target = $region52
        $region51: #{_forward_train.1} parent=35 // pred_region
          %p407 = scmp.lt.s32.totalorder %s22, 1
          %s408 = scalar_select %p407, %s22, 1
          %s409 = smul.addr %s408, 2
          %s410 = smul.addr %s409, 4
          %s411 = scalar_lea.vmem %s8, %s410
        $region52: #{_forward_train.1} parent=35 // pred_fallthru
          _
        // Predicated region
        $region53: #{_forward_train.1} parent=35 // pred_check
          %p412 = pneg %p251
        $region54: #{_forward_train.1} parent=35 // pred_check_branch
          %414 = sbr.rel (%p412) target = $region56
        $region55: #{_forward_train.1} parent=35 // pred_region
          %p415 = scmp.lt.s32.totalorder %s22, 1
          %s416 = scalar_select %p415, %s22, 1
          %s417 = smul.addr %s416, 2
          %s418 = scalar_lea.vmem %s9, %s417
        $region56: #{_forward_train.1} parent=35 // pred_fallthru
          _
      $region36: #{_forward_train.1} parent=5 // pred_fallthru
        _
      %p419 = scmp.le.s32.totalorder 1, %s22
      %p420 = scmp.lt.s32.totalorder %s22, 3
      %p421 = pnand %p419, %p420
      %p422 = pneg %p421
      // Predicated region
      $region57: #{_forward_train.1} parent=5 // pred_check
        _
      $region58: #{_forward_train.1} parent=5 // pred_check_branch
        %424 = sbr.rel (%p421) target = $region60
      $region59: #{_forward_train.1} parent=5 // pred_region
        %s425 = ssub.s32 %s22, 1
        %p426 = scmp.lt.s32.totalorder %s27, 1
        %s427 = scalar_select %p426, %s27, 1
        %s428 = smul.addr %s427, 2
        %s429 = smul.addr %s428, 4
        %s430 = scalar_lea.vmem %s0, %s429
        %p431 = pneg %p48
        %p432 = pneg %p45
        %p433 = pneg %p69
        %p434 = pneg %p66
        %p435 = pneg %p90
        %p436 = pneg %p87
        %p437 = pneg %p111
        %p438 = pneg %p108
        %p439 = pneg %p132
        %p440 = pneg %p129
        %p441 = pneg %p153
        %p442 = pneg %p150
        %p443 = scmp.lt.s32.totalorder %s27, 1
        %s444 = scalar_select %p443, %s27, 1
        %s445 = smul.addr %s444, 2
        %s446 = smul.addr %s445, 4
        %s447 = scalar_lea.vmem %s6, %s446
        %p448 = pneg %p179
        %p449 = pneg %p176
        %p450 = scmp.lt.s32.totalorder %s27, 1
        %s451 = scalar_select %p450, %s27, 1
        %s452 = smul.addr %s451, 2
        %s453 = smul.addr %s452, 2
        %s454 = scalar_lea.vmem %s7, %s453
        %p455 = pneg %p205
        %p456 = pneg %p202
        %p457 = scmp.lt.s32.totalorder %s27, 1
        %s458 = scalar_select %p457, %s27, 1
        %s459 = smul.addr %s458, 2
        %s460 = smul.addr %s459, 4
        %s461 = scalar_lea.vmem %s8, %s460
        %p462 = pneg %p231
        %p463 = pneg %p228
        %p464 = scmp.lt.s32.totalorder %s27, 1
        %s465 = scalar_select %p464, %s27, 1
        %s466 = smul.addr %s465, 2
        %s467 = scalar_lea.vmem %s9, %s466
        %p468 = pneg %p257
        %p469 = pneg %p254
        %p470 = pneg %p283
        %p471 = pneg %p280
        %p472 = scmp.lt.s32.totalorder %s27, 1
        %s473 = scalar_select %p472, %s27, 1
        %s474 = smul.addr %s473, 4
        %s475 = smul.addr %s474, 8
        %s476 = scalar_lea.vmem %s10, %s475
        %p477 = pneg %p304
        %p478 = pneg %p301
        %p479 = pneg %p325
        %p480 = pneg %p322
        %p481 = pneg %p346
        %p482 = pneg %p343
        %p483 = scmp.lt.s32.totalorder %s27, 1
        %s484 = scalar_select %p483, %s27, 1
        %s485 = smul.addr %s484, 2
        %s486 = smul.addr %s485, 4
        %s487 = scalar_lea.vmem %s0, %s486
        %p488 = scmp.lt.s32.totalorder %s27, 1
        %s489 = scalar_select %p488, %s27, 1
        %s490 = smul.addr %s489, 2
        %s491 = smul.addr %s490, 4
        %s492 = scalar_lea.vmem %s6, %s491
        %p493 = scmp.lt.s32.totalorder %s27, 1
        %s494 = scalar_select %p493, %s27, 1
        %s495 = smul.addr %s494, 2
        %s496 = smul.addr %s495, 2
        %s497 = scalar_lea.vmem %s7, %s496
        %p498 = scmp.lt.s32.totalorder %s27, 1
        %s499 = scalar_select %p498, %s27, 1
        %s500 = smul.addr %s499, 2
        %s501 = smul.addr %s500, 4
        %s502 = scalar_lea.vmem %s8, %s501
        %p503 = scmp.lt.s32.totalorder %s27, 1
        %s504 = scalar_select %p503, %s27, 1
        %s505 = smul.addr %s504, 2
        %s506 = scalar_lea.vmem %s9, %s505
        %p507 = scmp.lt.s32.totalorder %s27, 1
        %s508 = scalar_select %p507, %s27, 1
        %s509 = smul.addr %s508, 4
        %s510 = smul.addr %s509, 8
        %s511 = scalar_lea.vmem %s10, %s510
        %p513 = scmp.eq.s32.totalorder %s27, 0
        // Predicated region
        $region61: #{_forward_train.1} parent=59 // pred_check
          %p514 = pneg %p513
        $region62: #{_forward_train.1} parent=59 // pred_check_branch
          %516 = sbr.rel (%p514) target = $region64
        $region63: #{_forward_train.1} parent=59 // pred_region
          %s517 = scalar_lea.smem [#allocation2], 0
          %518 = sst [smem:[%s517]] 0.0
          %s519 = scalar_lea.smem [#allocation2], 1
          %520 = sst [smem:[%s519]] 0.0
          %s521 = scalar_lea.smem [#allocation2], 2
          %522 = sst [smem:[%s521]] 0.0
          %s523 = scalar_lea.smem [#allocation2], 3
          %524 = sst [smem:[%s523]] 0.0
          %s525 = scalar_lea.smem [#allocation2], 4
          %526 = sst [smem:[%s525]] 0.0
          %s527 = scalar_lea.smem [#allocation2], 5
          %528 = sst [smem:[%s527]] 0.0
        $region64: #{_forward_train.1} parent=59 // pred_fallthru
          _
        %v529 = vld [vmem:[%s487] sm:$0x77]
        %531 = vst [vmem:[#allocation1] ss:$2 sm:$0xff] %v529
        %v532 = vld.sshfl [vmem:[#allocation1] sm:$0xff pattern:$0x75316420]
        %v533 = vld.sshfl [vmem:[#allocation1 + $0x8] sm:$0xff pattern:$0x75316420]
        %536 = vrot.lane.b32.xlu0 %v532, 17
        %v537 = vpop.permute.xlu0 %536
        %538 = vrot.lane.b32.xlu0 %v533, 17
        %v539 = vpop.permute.xlu0 %538
        %v540 = vlaneseq
        %v541 = vand.u32 %v540, 127
        %vm542 = vcmp.lt.s32.totalorder %v541, 17
        %v543 = vsel %vm542, %v537, %v539
        %v544 = vsel %vm542, %v539, %v537
        %v545 = vld [vmem:[%s1] sm:$0x3]
        %v547 = vperm.slane %v545, 0
        %v548 = vperm.slane %v545, 1
        %v551 = vmul.f32 %v544, %v547
        %v552 = vmul.f32 %v543, %v548
        %v553 = vld [vmem:[%s2] sm:$0xf]
        %v554 = vld [vmem:[%s2 + $0x4] sm:$0xf]
        %v555 = vld [vmem:[%s2 + $0x8] sm:$0xf]
        %v556 = vld [vmem:[%s2 + $0xc] sm:$0xf]
        %v557 = vpack.c.bf16 %v551, %v551
        %v558 = vpack.c.bf16 %v552, %v552
        %559 = vst [vmem:[#allocation1] ss:$2 sm:$0xff] %v529
        %v560 = vld.sshfl [vmem:[#allocation1] sm:$0xff pattern:$0x75316420]
        %v561 = vld.sshfl [vmem:[#allocation1 + $0x8] sm:$0xff pattern:$0x75316420]
        %564 = vrot.lane.b32.xlu0 %v560, 16
        %v565 = vpop.permute.xlu0 %564
        %566 = vrot.lane.b32.xlu0 %v561, 16
        %v567 = vpop.permute.xlu0 %566
        %vm568 = vcmp.lt.s32.totalorder %v541, 16
        %v569 = vsel %vm568, %v565, %v567
        %v570 = vsel %vm568, %v567, %v565
        %s571 = scalar_lea.vmem %s1, 2
        %v572 = vld [vmem:[%s571] sm:$0x3]
        %v574 = vperm.slane %v572, 0
        %v575 = vperm.slane %v572, 1
        %v578 = vmul.f32 %v570, %v574
        %v579 = vmul.f32 %v569, %v575
        %s580 = scalar_lea.vmem %s2, 16
        %v581 = vld [vmem:[%s580] sm:$0xf]
        %v582 = vld [vmem:[%s580 + $0x4] sm:$0xf]
        %v583 = vld [vmem:[%s580 + $0x8] sm:$0xf]
        %v584 = vld [vmem:[%s580 + $0xc] sm:$0xf]
        %v585 = vpack.c.bf16 %v578, %v578
        %v586 = vpack.c.bf16 %v579, %v579
        %v591 = vunpack.c.l.b16 %v581
        %v592 = vunpack.c.l.b16 %v582
        %v593 = vunpack.c.l.b16 %v583
        %v594 = vunpack.c.l.b16 %v584
        %v595 = vpack.c.b16 %v592, %v591
        %v596 = vpack.c.b16 %v594, %v593
        %vm597 = vcmask 23552
        %v599 = vsel %vm597, %v595, 0
        %v602 = vsel %vm597, %v596, 0
        %vm604 = vcmask 1040384
        %vm605 = vcmask 1041408
        %v606 = vsel %vm604, 4294967295, 65535
        %v607 = vsel %vm605, %v606, 0
        %v609 = vand.u32 %v585, %v607
        %v612 = vand.u32 %v586, %v607
        %614 = vmatpush.bf16.msra.mxu0 0
        %615 = vmatpush.bf16.msra.mxu0 0
        %616 = vmatpush.bf16.msra.mxu0 0
        %617 = vmatpush.bf16.msra.mxu0 0
        %618 = vmatpush.bf16.msra.mxu0 0
        %619 = vmatpush.bf16.msra.mxu0 0
        %620 = vmatpush.bf16.msra.mxu0 0
        %621 = vmatpush.bf16.msra.mxu0 %v609
        %622 = vmatmul.bf16.gmra.mxu0 %v599
        %v623 = vpop.f32.mrf.mxu0
        %v624 = vadd.f32 0.0, %v623
        %v625 = vpop.f32.mrf.mxu0
        %v626 = vadd.f32 0.0, %v625
        %627 = vmatmul.bf16.gmra.mxu0 %v602
        %v628 = vpop.f32.mrf.mxu0
        %v629 = vadd.f32 0.0, %v628
        %v630 = vpop.f32.mrf.mxu0
        %v631 = vadd.f32 0.0, %v630
        %632 = vdwg.mxu0
        %633 = vmatpush.bf16.msra.mxu0 0
        %634 = vmatpush.bf16.msra.mxu0 0
        %635 = vmatpush.bf16.msra.mxu0 0
        %636 = vmatpush.bf16.msra.mxu0 0
        %637 = vmatpush.bf16.msra.mxu0 0
        %638 = vmatpush.bf16.msra.mxu0 0
        %639 = vmatpush.bf16.msra.mxu0 0
        %640 = vmatpush.bf16.msra.mxu0 %v612
        %641 = vmatmul.bf16.gmra.mxu0 %v599
        %v642 = vpop.f32.mrf.mxu0
        %v643 = vadd.f32 0.0, %v642
        %v644 = vpop.f32.mrf.mxu0
        %v645 = vadd.f32 0.0, %v644
        %646 = vmatmul.bf16.gmra.mxu0 %v602
        %v647 = vpop.f32.mrf.mxu0
        %v648 = vadd.f32 0.0, %v647
        %v649 = vpop.f32.mrf.mxu0
        %v650 = vadd.f32 0.0, %v649
        %651 = vdwg.mxu0
        %v656 = vunpack.c.l.b16 %v553
        %v657 = vunpack.c.l.b16 %v554
        %v658 = vunpack.c.l.b16 %v555
        %v659 = vunpack.c.l.b16 %v556
        %v660 = vpack.c.b16 %v657, %v656
        %v661 = vpack.c.b16 %v659, %v658
        %v663 = vsel %vm597, %v660, 0
        %v666 = vsel %vm597, %v661, 0
        %v669 = vand.u32 %v557, %v607
        %v672 = vand.u32 %v558, %v607
        %674 = vmatpush.bf16.msra.mxu0 0
        %675 = vmatpush.bf16.msra.mxu0 0
        %676 = vmatpush.bf16.msra.mxu0 0
        %677 = vmatpush.bf16.msra.mxu0 0
        %678 = vmatpush.bf16.msra.mxu0 0
        %679 = vmatpush.bf16.msra.mxu0 0
        %680 = vmatpush.bf16.msra.mxu0 0
        %681 = vmatpush.bf16.msra.mxu0 %v669
        %682 = vmatmul.bf16.gmra.mxu0 %v663
        %v683 = vpop.f32.mrf.mxu0
        %v684 = vadd.f32 %v624, %v683
        %v685 = vpop.f32.mrf.mxu0
        %v686 = vadd.f32 %v626, %v685
        %687 = vmatmul.bf16.gmra.mxu0 %v666
        %v688 = vpop.f32.mrf.mxu0
        %v689 = vadd.f32 %v629, %v688
        %v690 = vpop.f32.mrf.mxu0
        %v691 = vadd.f32 %v631, %v690
        %692 = vdwg.mxu0
        %693 = vmatpush.bf16.msra.mxu0 0
        %694 = vmatpush.bf16.msra.mxu0 0
        %695 = vmatpush.bf16.msra.mxu0 0
        %696 = vmatpush.bf16.msra.mxu0 0
        %697 = vmatpush.bf16.msra.mxu0 0
        %698 = vmatpush.bf16.msra.mxu0 0
        %699 = vmatpush.bf16.msra.mxu0 0
        %700 = vmatpush.bf16.msra.mxu0 %v672
        %701 = vmatmul.bf16.gmra.mxu0 %v663
        %v702 = vpop.f32.mrf.mxu0
        %v703 = vadd.f32 %v643, %v702
        %v704 = vpop.f32.mrf.mxu0
        %v705 = vadd.f32 %v645, %v704
        %706 = vmatmul.bf16.gmra.mxu0 %v666
        %v707 = vpop.f32.mrf.mxu0
        %v708 = vadd.f32 %v648, %v707
        %v709 = vpop.f32.mrf.mxu0
        %v710 = vadd.f32 %v650, %v709
        %711 = vdwg.mxu0
        %712 = vst [vmem:[#allocation1] ss:$2 sm:$0xff] %v529
        %v713 = vld.sshfl [vmem:[#allocation1] sm:$0xff pattern:$0x75316420]
        %v714 = vld.sshfl [vmem:[#allocation1 + $0x8] sm:$0xff pattern:$0x75316420]
        %717 = vrot.lane.b32.xlu0 %v713, 15
        %v718 = vpop.permute.xlu0 %717
        %719 = vrot.lane.b32.xlu0 %v714, 15
        %v720 = vpop.permute.xlu0 %719
        %vm721 = vcmp.lt.s32.totalorder %v541, 15
        %v722 = vsel %vm721, %v718, %v720
        %v723 = vsel %vm721, %v720, %v718
        %s724 = scalar_lea.vmem %s1, 4
        %v725 = vld [vmem:[%s724] sm:$0x3]
        %v727 = vperm.slane %v725, 0
        %v728 = vperm.slane %v725, 1
        %v731 = vmul.f32 %v723, %v727
        %v732 = vmul.f32 %v722, %v728
        %s733 = scalar_lea.vmem %s2, 32
        %v734 = vld [vmem:[%s733] sm:$0xf]
        %v735 = vld [vmem:[%s733 + $0x4] sm:$0xf]
        %v736 = vld [vmem:[%s733 + $0x8] sm:$0xf]
        %v737 = vld [vmem:[%s733 + $0xc] sm:$0xf]
        %v738 = vpack.c.bf16 %v731, %v731
        %v739 = vpack.c.bf16 %v732, %v732
        %v744 = vunpack.c.l.b16 %v734
        %v745 = vunpack.c.l.b16 %v735
        %v746 = vunpack.c.l.b16 %v736
        %v747 = vunpack.c.l.b16 %v737
        %v748 = vpack.c.b16 %v745, %v744
        %v749 = vpack.c.b16 %v747, %v746
        %v751 = vsel %vm597, %v748, 0
        %v754 = vsel %vm597, %v749, 0
        %v757 = vand.u32 %v738, %v607
        %v760 = vand.u32 %v739, %v607
        %762 = vmatpush.bf16.msra.mxu0 0
        %763 = vmatpush.bf16.msra.mxu0 0
        %764 = vmatpush.bf16.msra.mxu0 0
        %765 = vmatpush.bf16.msra.mxu0 0
        %766 = vmatpush.bf16.msra.mxu0 0
        %767 = vmatpush.bf16.msra.mxu0 0
        %768 = vmatpush.bf16.msra.mxu0 0
        %769 = vmatpush.bf16.msra.mxu0 %v757
        %770 = vmatmul.bf16.gmra.mxu0 %v751
        %v771 = vpop.f32.mrf.mxu0
        %v772 = vadd.f32 0.0, %v771
        %v773 = vpop.f32.mrf.mxu0
        %v774 = vadd.f32 0.0, %v773
        %775 = vmatmul.bf16.gmra.mxu0 %v754
        %v776 = vpop.f32.mrf.mxu0
        %v777 = vadd.f32 0.0, %v776
        %v778 = vpop.f32.mrf.mxu0
        %v779 = vadd.f32 0.0, %v778
        %780 = vdwg.mxu0
        %781 = vmatpush.bf16.msra.mxu0 0
        %782 = vmatpush.bf16.msra.mxu0 0
        %783 = vmatpush.bf16.msra.mxu0 0
        %784 = vmatpush.bf16.msra.mxu0 0
        %785 = vmatpush.bf16.msra.mxu0 0
        %786 = vmatpush.bf16.msra.mxu0 0
        %787 = vmatpush.bf16.msra.mxu0 0
        %788 = vmatpush.bf16.msra.mxu0 %v760
        %789 = vmatmul.bf16.gmra.mxu0 %v751
        %v790 = vpop.f32.mrf.mxu0
        %v791 = vadd.f32 0.0, %v790
        %v792 = vpop.f32.mrf.mxu0
        %v793 = vadd.f32 0.0, %v792
        %794 = vmatmul.bf16.gmra.mxu0 %v754
        %v795 = vpop.f32.mrf.mxu0
        %v796 = vadd.f32 0.0, %v795
        %v797 = vpop.f32.mrf.mxu0
        %v798 = vadd.f32 0.0, %v797
        %799 = vdwg.mxu0
        %v800 = vadd.f32 %v684, %v772
        %v801 = vadd.f32 %v703, %v791
        %v802 = vadd.f32 %v686, %v774
        %v803 = vadd.f32 %v705, %v793
        %v804 = vadd.f32 %v689, %v777
        %v805 = vadd.f32 %v708, %v796
        %v806 = vadd.f32 %v691, %v779
        %v807 = vadd.f32 %v710, %v798
        %808 = vst [vmem:[#allocation1] ss:$2 sm:$0xff] %v529
        %v809 = vld.sshfl [vmem:[#allocation1] sm:$0xff pattern:$0x75316420]
        %v810 = vld.sshfl [vmem:[#allocation1 + $0x8] sm:$0xff pattern:$0x75316420]
        %813 = vrot.lane.b32.xlu0 %v809, 1
        %v814 = vpop.permute.xlu0 %813
        %815 = vrot.lane.b32.xlu0 %v810, 1
        %v816 = vpop.permute.xlu0 %815
        %vm817 = vcmp.lt.s32.totalorder %v541, 1
        %v818 = vsel %vm817, %v814, %v816
        %v819 = vsel %vm817, %v816, %v814
        %s820 = scalar_lea.vmem %s1, 6
        %v821 = vld [vmem:[%s820] sm:$0x3]
        %v823 = vperm.slane %v821, 0
        %v824 = vperm.slane %v821, 1
        %v827 = vmul.f32 %v819, %v823
        %v828 = vmul.f32 %v818, %v824
        %s829 = scalar_lea.vmem %s2, 48
        %v830 = vld [vmem:[%s829] sm:$0xf]
        %v831 = vld [vmem:[%s829 + $0x4] sm:$0xf]
        %v832 = vld [vmem:[%s829 + $0x8] sm:$0xf]
        %v833 = vld [vmem:[%s829 + $0xc] sm:$0xf]
        %v834 = vpack.c.bf16 %v827, %v827
        %v835 = vpack.c.bf16 %v828, %v828
        %v840 = vunpack.c.l.b16 %v830
        %v841 = vunpack.c.l.b16 %v831
        %v842 = vunpack.c.l.b16 %v832
        %v843 = vunpack.c.l.b16 %v833
        %v844 = vpack.c.b16 %v841, %v840
        %v845 = vpack.c.b16 %v843, %v842
        %v847 = vsel %vm597, %v844, 0
        %v850 = vsel %vm597, %v845, 0
        %v853 = vand.u32 %v834, %v607
        %v856 = vand.u32 %v835, %v607
        %858 = vmatpush.bf16.msra.mxu0 0
        %859 = vmatpush.bf16.msra.mxu0 0
        %860 = vmatpush.bf16.msra.mxu0 0
        %861 = vmatpush.bf16.msra.mxu0 0
        %862 = vmatpush.bf16.msra.mxu0 0
        %863 = vmatpush.bf16.msra.mxu0 0
        %864 = vmatpush.bf16.msra.mxu0 0
        %865 = vmatpush.bf16.msra.mxu0 %v853
        %866 = vmatmul.bf16.gmra.mxu0 %v847
        %v867 = vpop.f32.mrf.mxu0
        %v868 = vadd.f32 0.0, %v867
        %v869 = vpop.f32.mrf.mxu0
        %v870 = vadd.f32 0.0, %v869
        %871 = vmatmul.bf16.gmra.mxu0 %v850
        %v872 = vpop.f32.mrf.mxu0
        %v873 = vadd.f32 0.0, %v872
        %v874 = vpop.f32.mrf.mxu0
        %v875 = vadd.f32 0.0, %v874
        %876 = vdwg.mxu0
        %877 = vmatpush.bf16.msra.mxu0 0
        %878 = vmatpush.bf16.msra.mxu0 0
        %879 = vmatpush.bf16.msra.mxu0 0
        %880 = vmatpush.bf16.msra.mxu0 0
        %881 = vmatpush.bf16.msra.mxu0 0
        %882 = vmatpush.bf16.msra.mxu0 0
        %883 = vmatpush.bf16.msra.mxu0 0
        %884 = vmatpush.bf16.msra.mxu0 %v856
        %885 = vmatmul.bf16.gmra.mxu0 %v847
        %v886 = vpop.f32.mrf.mxu0
        %v887 = vadd.f32 0.0, %v886
        %v888 = vpop.f32.mrf.mxu0
        %v889 = vadd.f32 0.0, %v888
        %890 = vmatmul.bf16.gmra.mxu0 %v850
        %v891 = vpop.f32.mrf.mxu0
        %v892 = vadd.f32 0.0, %v891
        %v893 = vpop.f32.mrf.mxu0
        %v894 = vadd.f32 0.0, %v893
        %895 = vdwg.mxu0
        %v896 = vadd.f32 %v800, %v868
        %v897 = vadd.f32 %v801, %v887
        %v898 = vadd.f32 %v802, %v870
        %v899 = vadd.f32 %v803, %v889
        %v900 = vadd.f32 %v804, %v873
        %v901 = vadd.f32 %v805, %v892
        %v902 = vadd.f32 %v806, %v875
        %v903 = vadd.f32 %v807, %v894
        %s904 = scalar_lea.vmem %s2, 64
        %v905 = vld [vmem:[%s904] sm:$0xf]
        %v906 = vld [vmem:[%s904 + $0x4] sm:$0xf]
        %v907 = vld [vmem:[%s904 + $0x8] sm:$0xf]
        %v908 = vld [vmem:[%s904 + $0xc] sm:$0xf]
        %909 = vst [vmem:[#allocation1] ss:$2 sm:$0xff] %v529
        %v910 = vld.sshfl [vmem:[#allocation1] sm:$0xff pattern:$0x75316420]
        %v911 = vld.sshfl [vmem:[#allocation1 + $0x8] sm:$0xff pattern:$0x75316420]
        %v914 = vpack.c.bf16 %v910, %v910
        %v915 = vpack.c.bf16 %v911, %v911
        %v920 = vunpack.c.l.b16 %v905
        %v921 = vunpack.c.l.b16 %v906
        %v922 = vunpack.c.l.b16 %v907
        %v923 = vunpack.c.l.b16 %v908
        %v924 = vpack.c.b16 %v921, %v920
        %v925 = vpack.c.b16 %v923, %v922
        %v927 = vsel %vm597, %v924, 0
        %v930 = vsel %vm597, %v925, 0
        %v933 = vand.u32 %v914, %v607
        %v936 = vand.u32 %v915, %v607
        %938 = vmatpush.bf16.msra.mxu0 0
        %939 = vmatpush.bf16.msra.mxu0 0
        %940 = vmatpush.bf16.msra.mxu0 0
        %941 = vmatpush.bf16.msra.mxu0 0
        %942 = vmatpush.bf16.msra.mxu0 0
        %943 = vmatpush.bf16.msra.mxu0 0
        %944 = vmatpush.bf16.msra.mxu0 0
        %945 = vmatpush.bf16.msra.mxu0 %v933
        %946 = vmatmul.bf16.gmra.mxu0 %v927
        %v947 = vpop.f32.mrf.mxu0
        %v948 = vadd.f32 0.0, %v947
        %v949 = vpop.f32.mrf.mxu0
        %v950 = vadd.f32 0.0, %v949
        %951 = vmatmul.bf16.gmra.mxu0 %v930
        %v952 = vpop.f32.mrf.mxu0
        %v953 = vadd.f32 0.0, %v952
        %v954 = vpop.f32.mrf.mxu0
        %v955 = vadd.f32 0.0, %v954
        %956 = vdwg.mxu0
        %957 = vmatpush.bf16.msra.mxu0 0
        %958 = vmatpush.bf16.msra.mxu0 0
        %959 = vmatpush.bf16.msra.mxu0 0
        %960 = vmatpush.bf16.msra.mxu0 0
        %961 = vmatpush.bf16.msra.mxu0 0
        %962 = vmatpush.bf16.msra.mxu0 0
        %963 = vmatpush.bf16.msra.mxu0 0
        %964 = vmatpush.bf16.msra.mxu0 %v936
        %965 = vmatmul.bf16.gmra.mxu0 %v927
        %v966 = vpop.f32.mrf.mxu0
        %v967 = vadd.f32 0.0, %v966
        %v968 = vpop.f32.mrf.mxu0
        %v969 = vadd.f32 0.0, %v968
        %970 = vmatmul.bf16.gmra.mxu0 %v930
        %v971 = vpop.f32.mrf.mxu0
        %v972 = vadd.f32 0.0, %v971
        %v973 = vpop.f32.mrf.mxu0
        %v974 = vadd.f32 0.0, %v973
        %975 = vdwg.mxu0
        %v976 = vadd.f32 %v896, %v948
        %v977 = vadd.f32 %v897, %v967
        %v978 = vadd.f32 %v898, %v950
        %v979 = vadd.f32 %v899, %v969
        %v980 = vadd.f32 %v900, %v953
        %v981 = vadd.f32 %v901, %v972
        %v982 = vadd.f32 %v902, %v955
        %v983 = vadd.f32 %v903, %v974
        %984 = vst [vmem:[#allocation1] ss:$2 sm:$0xff] %v529
        %v985 = vld.sshfl [vmem:[#allocation1] sm:$0xff pattern:$0x75316420]
        %v986 = vld.sshfl [vmem:[#allocation1 + $0x8] sm:$0xff pattern:$0x75316420]
        %989 = vrot.lane.b32.xlu0 %v985, 127
        %v990 = vpop.permute.xlu0 %989
        %991 = vrot.lane.b32.xlu0 %v986, 127
        %v992 = vpop.permute.xlu0 %991
        %vm993 = vcmp.lt.s32.totalorder %v541, 127
        %v994 = vsel %vm993, %v990, %v992
        %v995 = vsel %vm993, %v992, %v990
        %s996 = scalar_lea.vmem %s1, 10
        %v997 = vld [vmem:[%s996] sm:$0x3]
        %v999 = vperm.slane %v997, 0
        %v1000 = vperm.slane %v997, 1
        %v1003 = vmul.f32 %v994, %v999
        %v1004 = vmul.f32 %v995, %v1000
        %s1005 = scalar_lea.vmem %s2, 80
        %v1006 = vld [vmem:[%s1005] sm:$0xf]
        %v1007 = vld [vmem:[%s1005 + $0x4] sm:$0xf]
        %v1008 = vld [vmem:[%s1005 + $0x8] sm:$0xf]
        %v1009 = vld [vmem:[%s1005 + $0xc] sm:$0xf]
        %v1010 = vpack.c.bf16 %v1003, %v1003
        %v1011 = vpack.c.bf16 %v1004, %v1004
        %v1016 = vunpack.c.l.b16 %v1006
        %v1017 = vunpack.c.l.b16 %v1007
        %v1018 = vunpack.c.l.b16 %v1008
        %v1019 = vunpack.c.l.b16 %v1009
        %v1020 = vpack.c.b16 %v1017, %v1016
        %v1021 = vpack.c.b16 %v1019, %v1018
        %v1023 = vsel %vm597, %v1020, 0
        %v1026 = vsel %vm597, %v1021, 0
        %v1029 = vand.u32 %v1010, %v607
        %v1032 = vand.u32 %v1011, %v607
        %1034 = vmatpush.bf16.msra.mxu0 0
        %1035 = vmatpush.bf16.msra.mxu0 0
        %1036 = vmatpush.bf16.msra.mxu0 0
        %1037 = vmatpush.bf16.msra.mxu0 0
        %1038 = vmatpush.bf16.msra.mxu0 0
        %1039 = vmatpush.bf16.msra.mxu0 0
        %1040 = vmatpush.bf16.msra.mxu0 0
        %1041 = vmatpush.bf16.msra.mxu0 %v1029
        %1042 = vmatmul.bf16.gmra.mxu0 %v1023
        %v1043 = vpop.f32.mrf.mxu0
        %v1044 = vadd.f32 0.0, %v1043
        %v1045 = vpop.f32.mrf.mxu0
        %v1046 = vadd.f32 0.0, %v1045
        %1047 = vmatmul.bf16.gmra.mxu0 %v1026
        %v1048 = vpop.f32.mrf.mxu0
        %v1049 = vadd.f32 0.0, %v1048
        %v1050 = vpop.f32.mrf.mxu0
        %v1051 = vadd.f32 0.0, %v1050
        %1052 = vdwg.mxu0
        %1053 = vmatpush.bf16.msra.mxu0 0
        %1054 = vmatpush.bf16.msra.mxu0 0
        %1055 = vmatpush.bf16.msra.mxu0 0
        %1056 = vmatpush.bf16.msra.mxu0 0
        %1057 = vmatpush.bf16.msra.mxu0 0
        %1058 = vmatpush.bf16.msra.mxu0 0
        %1059 = vmatpush.bf16.msra.mxu0 0
        %1060 = vmatpush.bf16.msra.mxu0 %v1032
        %1061 = vmatmul.bf16.gmra.mxu0 %v1023
        %v1062 = vpop.f32.mrf.mxu0
        %v1063 = vadd.f32 0.0, %v1062
        %v1064 = vpop.f32.mrf.mxu0
        %v1065 = vadd.f32 0.0, %v1064
        %1066 = vmatmul.bf16.gmra.mxu0 %v1026
        %v1067 = vpop.f32.mrf.mxu0
        %v1068 = vadd.f32 0.0, %v1067
        %v1069 = vpop.f32.mrf.mxu0
        %v1070 = vadd.f32 0.0, %v1069
        %1071 = vdwg.mxu0
        %v1072 = vadd.f32 %v976, %v1044
        %v1073 = vadd.f32 %v977, %v1063
        %v1074 = vadd.f32 %v978, %v1046
        %v1075 = vadd.f32 %v979, %v1065
        %v1076 = vadd.f32 %v980, %v1049
        %v1077 = vadd.f32 %v981, %v1068
        %v1078 = vadd.f32 %v982, %v1051
        %v1079 = vadd.f32 %v983, %v1070
        %1080 = vst [vmem:[#allocation1] ss:$2 sm:$0xff] %v529
        %v1081 = vld.sshfl [vmem:[#allocation1] sm:$0xff pattern:$0x75316420]
        %v1082 = vld.sshfl [vmem:[#allocation1 + $0x8] sm:$0xff pattern:$0x75316420]
        %1085 = vrot.lane.b32.xlu0 %v1081, 113
        %v1086 = vpop.permute.xlu0 %1085
        %1087 = vrot.lane.b32.xlu0 %v1082, 113
        %v1088 = vpop.permute.xlu0 %1087
        %vm1089 = vcmp.lt.s32.totalorder %v541, 113
        %v1090 = vsel %vm1089, %v1086, %v1088
        %v1091 = vsel %vm1089, %v1088, %v1086
        %s1092 = scalar_lea.vmem %s1, 12
        %v1093 = vld [vmem:[%s1092] sm:$0x3]
        %v1095 = vperm.slane %v1093, 0
        %v1096 = vperm.slane %v1093, 1
        %v1099 = vmul.f32 %v1090, %v1095
        %v1100 = vmul.f32 %v1091, %v1096
        %s1101 = scalar_lea.vmem %s2, 96
        %v1102 = vld [vmem:[%s1101] sm:$0xf]
        %v1103 = vld [vmem:[%s1101 + $0x4] sm:$0xf]
        %v1104 = vld [vmem:[%s1101 + $0x8] sm:$0xf]
        %v1105 = vld [vmem:[%s1101 + $0xc] sm:$0xf]
        %v1106 = vpack.c.bf16 %v1099, %v1099
        %v1107 = vpack.c.bf16 %v1100, %v1100
        %v1112 = vunpack.c.l.b16 %v1102
        %v1113 = vunpack.c.l.b16 %v1103
        %v1114 = vunpack.c.l.b16 %v1104
        %v1115 = vunpack.c.l.b16 %v1105
        %v1116 = vpack.c.b16 %v1113, %v1112
        %v1117 = vpack.c.b16 %v1115, %v1114
        %v1119 = vsel %vm597, %v1116, 0
        %v1122 = vsel %vm597, %v1117, 0
        %v1125 = vand.u32 %v1106, %v607
        %v1128 = vand.u32 %v1107, %v607
        %1130 = vmatpush.bf16.msra.mxu0 0
        %1131 = vmatpush.bf16.msra.mxu0 0
        %1132 = vmatpush.bf16.msra.mxu0 0
        %1133 = vmatpush.bf16.msra.mxu0 0
        %1134 = vmatpush.bf16.msra.mxu0 0
        %1135 = vmatpush.bf16.msra.mxu0 0
        %1136 = vmatpush.bf16.msra.mxu0 0
        %1137 = vmatpush.bf16.msra.mxu0 %v1125
        %1138 = vmatmul.bf16.gmra.mxu0 %v1119
        %v1139 = vpop.f32.mrf.mxu0
        %v1140 = vadd.f32 0.0, %v1139
        %v1141 = vpop.f32.mrf.mxu0
        %v1142 = vadd.f32 0.0, %v1141
        %1143 = vmatmul.bf16.gmra.mxu0 %v1122
        %v1144 = vpop.f32.mrf.mxu0
        %v1145 = vadd.f32 0.0, %v1144
        %v1146 = vpop.f32.mrf.mxu0
        %v1147 = vadd.f32 0.0, %v1146
        %1148 = vdwg.mxu0
        %1149 = vmatpush.bf16.msra.mxu0 0
        %1150 = vmatpush.bf16.msra.mxu0 0
        %1151 = vmatpush.bf16.msra.mxu0 0
        %1152 = vmatpush.bf16.msra.mxu0 0
        %1153 = vmatpush.bf16.msra.mxu0 0
        %1154 = vmatpush.bf16.msra.mxu0 0
        %1155 = vmatpush.bf16.msra.mxu0 0
        %1156 = vmatpush.bf16.msra.mxu0 %v1128
        %1157 = vmatmul.bf16.gmra.mxu0 %v1119
        %v1158 = vpop.f32.mrf.mxu0
        %v1159 = vadd.f32 0.0, %v1158
        %v1160 = vpop.f32.mrf.mxu0
        %v1161 = vadd.f32 0.0, %v1160
        %1162 = vmatmul.bf16.gmra.mxu0 %v1122
        %v1163 = vpop.f32.mrf.mxu0
        %v1164 = vadd.f32 0.0, %v1163
        %v1165 = vpop.f32.mrf.mxu0
        %v1166 = vadd.f32 0.0, %v1165
        %1167 = vdwg.mxu0
        %v1168 = vadd.f32 %v1072, %v1140
        %v1169 = vadd.f32 %v1073, %v1159
        %v1170 = vadd.f32 %v1074, %v1142
        %v1171 = vadd.f32 %v1075, %v1161
        %v1172 = vadd.f32 %v1076, %v1145
        %v1173 = vadd.f32 %v1077, %v1164
        %v1174 = vadd.f32 %v1078, %v1147
        %v1175 = vadd.f32 %v1079, %v1166
        %1176 = vst [vmem:[#allocation1] ss:$2 sm:$0xff] %v529
        %v1177 = vld.sshfl [vmem:[#allocation1] sm:$0xff pattern:$0x75316420]
        %v1178 = vld.sshfl [vmem:[#allocation1 + $0x8] sm:$0xff pattern:$0x75316420]
        %1181 = vrot.lane.b32.xlu0 %v1177, 112
        %v1182 = vpop.permute.xlu0 %1181
        %1183 = vrot.lane.b32.xlu0 %v1178, 112
        %v1184 = vpop.permute.xlu0 %1183
        %vm1185 = vcmp.lt.s32.totalorder %v541, 112
        %v1186 = vsel %vm1185, %v1182, %v1184
        %v1187 = vsel %vm1185, %v1184, %v1182
        %s1188 = scalar_lea.vmem %s1, 14
        %v1189 = vld [vmem:[%s1188] sm:$0x3]
        %v1191 = vperm.slane %v1189, 0
        %v1192 = vperm.slane %v1189, 1
        %v1195 = vmul.f32 %v1186, %v1191
        %v1196 = vmul.f32 %v1187, %v1192
        %s1197 = scalar_lea.vmem %s2, 112
        %v1198 = vld [vmem:[%s1197] sm:$0xf]
        %v1199 = vld [vmem:[%s1197 + $0x4] sm:$0xf]
        %v1200 = vld [vmem:[%s1197 + $0x8] sm:$0xf]
        %v1201 = vld [vmem:[%s1197 + $0xc] sm:$0xf]
        %v1202 = vpack.c.bf16 %v1195, %v1195
        %v1203 = vpack.c.bf16 %v1196, %v1196
        %v1208 = vunpack.c.l.b16 %v1198
        %v1209 = vunpack.c.l.b16 %v1199
        %v1210 = vunpack.c.l.b16 %v1200
        %v1211 = vunpack.c.l.b16 %v1201
        %v1212 = vpack.c.b16 %v1209, %v1208
        %v1213 = vpack.c.b16 %v1211, %v1210
        %v1215 = vsel %vm597, %v1212, 0
        %v1218 = vsel %vm597, %v1213, 0
        %v1221 = vand.u32 %v1202, %v607
        %v1224 = vand.u32 %v1203, %v607
        %1226 = vmatpush.bf16.msra.mxu0 0
        %1227 = vmatpush.bf16.msra.mxu0 0
        %1228 = vmatpush.bf16.msra.mxu0 0
        %1229 = vmatpush.bf16.msra.mxu0 0
        %1230 = vmatpush.bf16.msra.mxu0 0
        %1231 = vmatpush.bf16.msra.mxu0 0
        %1232 = vmatpush.bf16.msra.mxu0 0
        %1233 = vmatpush.bf16.msra.mxu0 %v1221
        %1234 = vmatmul.bf16.gmra.mxu0 %v1215
        %v1235 = vpop.f32.mrf.mxu0
        %v1236 = vadd.f32 0.0, %v1235
        %v1237 = vpop.f32.mrf.mxu0
        %v1238 = vadd.f32 0.0, %v1237
        %1239 = vmatmul.bf16.gmra.mxu0 %v1218
        %v1240 = vpop.f32.mrf.mxu0
        %v1241 = vadd.f32 0.0, %v1240
        %v1242 = vpop.f32.mrf.mxu0
        %v1243 = vadd.f32 0.0, %v1242
        %1244 = vdwg.mxu0
        %1245 = vmatpush.bf16.msra.mxu0 0
        %1246 = vmatpush.bf16.msra.mxu0 0
        %1247 = vmatpush.bf16.msra.mxu0 0
        %1248 = vmatpush.bf16.msra.mxu0 0
        %1249 = vmatpush.bf16.msra.mxu0 0
        %1250 = vmatpush.bf16.msra.mxu0 0
        %1251 = vmatpush.bf16.msra.mxu0 0
        %1252 = vmatpush.bf16.msra.mxu0 %v1224
        %1253 = vmatmul.bf16.gmra.mxu0 %v1215
        %v1254 = vpop.f32.mrf.mxu0
        %v1255 = vadd.f32 0.0, %v1254
        %v1256 = vpop.f32.mrf.mxu0
        %v1257 = vadd.f32 0.0, %v1256
        %1258 = vmatmul.bf16.gmra.mxu0 %v1218
        %v1259 = vpop.f32.mrf.mxu0
        %v1260 = vadd.f32 0.0, %v1259
        %v1261 = vpop.f32.mrf.mxu0
        %v1262 = vadd.f32 0.0, %v1261
        %1263 = vdwg.mxu0
        %v1264 = vadd.f32 %v1168, %v1236
        %v1265 = vadd.f32 %v1169, %v1255
        %v1266 = vadd.f32 %v1170, %v1238
        %v1267 = vadd.f32 %v1171, %v1257
        %v1268 = vadd.f32 %v1172, %v1241
        %v1269 = vadd.f32 %v1173, %v1260
        %v1270 = vadd.f32 %v1174, %v1243
        %v1271 = vadd.f32 %v1175, %v1262
        %1272 = vst [vmem:[#allocation1] ss:$2 sm:$0xff] %v529
        %v1273 = vld.sshfl [vmem:[#allocation1] sm:$0xff pattern:$0x75316420]
        %v1274 = vld.sshfl [vmem:[#allocation1 + $0x8] sm:$0xff pattern:$0x75316420]
        %1277 = vrot.lane.b32.xlu0 %v1273, 111
        %v1278 = vpop.permute.xlu0 %1277
        %1279 = vrot.lane.b32.xlu0 %v1274, 111
        %v1280 = vpop.permute.xlu0 %1279
        %vm1281 = vcmp.lt.s32.totalorder %v541, 111
        %v1282 = vsel %vm1281, %v1278, %v1280
        %v1283 = vsel %vm1281, %v1280, %v1278
        %s1284 = scalar_lea.vmem %s1, 16
        %v1285 = vld [vmem:[%s1284] sm:$0x3]
        %v1287 = vperm.slane %v1285, 0
        %v1288 = vperm.slane %v1285, 1
        %v1291 = vmul.f32 %v1282, %v1287
        %v1292 = vmul.f32 %v1283, %v1288
        %s1293 = scalar_lea.vmem %s2, 128
        %v1294 = vld [vmem:[%s1293] sm:$0xf]
        %v1295 = vld [vmem:[%s1293 + $0x4] sm:$0xf]
        %v1296 = vld [vmem:[%s1293 + $0x8] sm:$0xf]
        %v1297 = vld [vmem:[%s1293 + $0xc] sm:$0xf]
        %v1298 = vpack.c.bf16 %v1291, %v1291
        %v1299 = vpack.c.bf16 %v1292, %v1292
        %v1304 = vunpack.c.l.b16 %v1294
        %v1305 = vunpack.c.l.b16 %v1295
        %v1306 = vunpack.c.l.b16 %v1296
        %v1307 = vunpack.c.l.b16 %v1297
        %v1308 = vpack.c.b16 %v1305, %v1304
        %v1309 = vpack.c.b16 %v1307, %v1306
        %v1311 = vsel %vm597, %v1308, 0
        %v1314 = vsel %vm597, %v1309, 0
        %v1317 = vand.u32 %v1298, %v607
        %v1320 = vand.u32 %v1299, %v607
        %1322 = vmatpush.bf16.msra.mxu0 0
        %1323 = vmatpush.bf16.msra.mxu0 0
        %1324 = vmatpush.bf16.msra.mxu0 0
        %1325 = vmatpush.bf16.msra.mxu0 0
        %1326 = vmatpush.bf16.msra.mxu0 0
        %1327 = vmatpush.bf16.msra.mxu0 0
        %1328 = vmatpush.bf16.msra.mxu0 0
        %1329 = vmatpush.bf16.msra.mxu0 %v1317
        %1330 = vmatmul.bf16.gmra.mxu0 %v1311
        %v1331 = vpop.f32.mrf.mxu0
        %v1332 = vadd.f32 0.0, %v1331
        %v1333 = vpop.f32.mrf.mxu0
        %v1334 = vadd.f32 0.0, %v1333
        %1335 = vmatmul.bf16.gmra.mxu0 %v1314
        %v1336 = vpop.f32.mrf.mxu0
        %v1337 = vadd.f32 0.0, %v1336
        %v1338 = vpop.f32.mrf.mxu0
        %v1339 = vadd.f32 0.0, %v1338
        %1340 = vdwg.mxu0
        %1341 = vmatpush.bf16.msra.mxu0 0
        %1342 = vmatpush.bf16.msra.mxu0 0
        %1343 = vmatpush.bf16.msra.mxu0 0
        %1344 = vmatpush.bf16.msra.mxu0 0
        %1345 = vmatpush.bf16.msra.mxu0 0
        %1346 = vmatpush.bf16.msra.mxu0 0
        %1347 = vmatpush.bf16.msra.mxu0 0
        %1348 = vmatpush.bf16.msra.mxu0 %v1320
        %1349 = vmatmul.bf16.gmra.mxu0 %v1311
        %v1350 = vpop.f32.mrf.mxu0
        %v1351 = vadd.f32 0.0, %v1350
        %v1352 = vpop.f32.mrf.mxu0
        %v1353 = vadd.f32 0.0, %v1352
        %1354 = vmatmul.bf16.gmra.mxu0 %v1314
        %v1355 = vpop.f32.mrf.mxu0
        %v1356 = vadd.f32 0.0, %v1355
        %v1357 = vpop.f32.mrf.mxu0
        %v1358 = vadd.f32 0.0, %v1357
        %1359 = vdwg.mxu0
        %v1360 = vadd.f32 %v1264, %v1332
        %v1361 = vadd.f32 %v1265, %v1351
        %v1362 = vadd.f32 %v1266, %v1334
        %v1363 = vadd.f32 %v1267, %v1353
        %v1364 = vadd.f32 %v1268, %v1337
        %v1365 = vadd.f32 %v1269, %v1356
        %v1366 = vadd.f32 %v1270, %v1339
        %v1367 = vadd.f32 %v1271, %v1358
        %v1368 = vld [vmem:[%s3] sm:$0xff]
        %v1369 = vld [vmem:[%s3 + $0x8] sm:$0xff]
        %v1370 = vld [vmem:[%s3 + $0x10] sm:$0xff]
        %v1371 = vld [vmem:[%s3 + $0x18] sm:$0xff]
        %1373 = vset.pattern.permute.xlu0 0
        %1374 = vperm.xlu0 %1373, %v1368
        %v1375 = vpop.permute.xlu0 %1374
        %1378 = vset.pattern.permute.xlu0 0
        %1379 = vperm.xlu0 %1378, %v1369
        %v1380 = vpop.permute.xlu0 %1379
        %1383 = vset.pattern.permute.xlu0 0
        %1384 = vperm.xlu0 %1383, %v1370
        %v1385 = vpop.permute.xlu0 %1384
        %1388 = vset.pattern.permute.xlu0 0
        %1389 = vperm.xlu0 %1388, %v1371
        %v1390 = vpop.permute.xlu0 %1389
        %v1392 = vadd.f32 %v1360, %v1375
        %v1393 = vadd.f32 %v1361, %v1375
        %v1394 = vadd.f32 %v1362, %v1380
        %v1395 = vadd.f32 %v1363, %v1380
        %v1396 = vadd.f32 %v1364, %v1385
        %v1397 = vadd.f32 %v1365, %v1385
        %v1398 = vadd.f32 %v1366, %v1390
        %v1399 = vadd.f32 %v1367, %v1390
        %v1400 = vmax.f32 %v1392, 0.0
        %v1401 = vmax.f32 %v1393, 0.0
        %v1402 = vmax.f32 %v1394, 0.0
        %v1403 = vmax.f32 %v1395, 0.0
        %v1404 = vmax.f32 %v1396, 0.0
        %v1405 = vmax.f32 %v1397, 0.0
        %v1406 = vmax.f32 %v1398, 0.0
        %v1407 = vmax.f32 %v1399, 0.0
        %v1408 = vld [vmem:[%s4] sm:$0xf]
        %v1409 = vld [vmem:[%s4 + $0x4] sm:$0x1]
        %v1410 = vpack.c.bf16 %v1402, %v1400
        %v1411 = vpack.c.bf16 %v1403, %v1401
        %v1412 = vpack.c.bf16 %v1406, %v1404
        %v1413 = vpack.c.bf16 %v1407, %v1405
        %v1414 = vld [vmem:[%s5] sm:$0xff]
        %v1415 = vld [vmem:[%s5 + $0x8] sm:$0x1]
        %1417 = vset.pattern.permute.xlu0 0
        %1418 = vperm.xlu0 %1417, %v1414
        %v1419 = vpop.permute.xlu0 %1418
        %1422 = vset.pattern.permute.xlu0 0
        %1423 = vperm.xlu0 %1422, %v1415
        %v1424 = vpop.permute.xlu0 %1423
        %v1428 = vunpack.c.l.b16 %v1408
        %v1429 = vunpack.c.l.b16 %v1409
        %v1430 = vpack.c.b16 %v1429, %v1428
        %vm1431 = vcmask 261120
        %v1433 = vsel %vm1431, %v1430, 0
        %1435 = vmatpush.bf16.msra.mxu0 0
        %1436 = vmatpush.bf16.msra.mxu0 0
        %1437 = vmatpush.bf16.msra.mxu0 0
        %1438 = vmatpush.bf16.msra.mxu0 0
        %1439 = vmatpush.bf16.msra.mxu0 0
        %1440 = vmatpush.bf16.msra.mxu0 0
        %1441 = vmatpush.bf16.msra.mxu0 %v1412
        %1442 = vmatpush.bf16.msra.mxu0 %v1410
        %1443 = vmatmul.bf16.gmra.mxu0 %v1433
        %v1444 = vpop.f32.mrf.mxu0
        %v1445 = vadd.f32 %v1419, %v1444
        %v1446 = vpop.f32.mrf.mxu0
        %v1447 = vadd.f32 %v1424, %v1446
        %1448 = vdwg.mxu0
        %1449 = vmatpush.bf16.msra.mxu0 0
        %1450 = vmatpush.bf16.msra.mxu0 0
        %1451 = vmatpush.bf16.msra.mxu0 0
        %1452 = vmatpush.bf16.msra.mxu0 0
        %1453 = vmatpush.bf16.msra.mxu0 0
        %1454 = vmatpush.bf16.msra.mxu0 0
        %1455 = vmatpush.bf16.msra.mxu0 %v1413
        %1456 = vmatpush.bf16.msra.mxu0 %v1411
        %1457 = vmatmul.bf16.gmra.mxu0 %v1433
        %v1458 = vpop.f32.mrf.mxu0
        %v1459 = vadd.f32 %v1419, %v1458
        %v1460 = vpop.f32.mrf.mxu0
        %v1461 = vadd.f32 %v1424, %v1460
        %1462 = vdwg.mxu0
        %1463 = vst [vmem:[%s511] sm:$0xff] %v1445
        %1464 = vst [vmem:[%s511 + $0x8] sm:$0xff] %v1459
        %1465 = vst [vmem:[%s511 + $0x10] sm:$0x1] %v1447
        %1466 = vst [vmem:[%s511 + $0x18] sm:$0x1] %v1461
        %v1467 = vld [vmem:[%s492] sm:$0xff]
        %v1468 = vxor.u32 %v1445, 2147483648
        %v1469 = vxor.u32 %v1459, 2147483648
        %v1470 = vmul.f32 %v1468, 1.442695
        %v1471 = vpow.pop %v1470
        %v1472 = vmul.f32 %v1469, 1.442695
        %v1473 = vpow.pop %v1472
        %v1474 = vadd.f32 %v1471, 1.0
        %v1475 = vadd.f32 %v1473, 1.0
        %v1476 = vrcp.pop %v1474
        %v1477 = vmul.f32 %v1474, %v1476
        %v1478 = vsub.f32 1.0, %v1477
        %v1479 = vmul.f32 %v1476, %v1478
        %v1480 = vadd.f32 %v1476, %v1479
        %vm1481 = vweird.f32 %v1474
        %vm1482 = vweird.f32 %v1476
        %vm1483 = vmor %vm1481, %vm1482
        %v1484 = vsel %vm1483, %v1476, %v1480
        %v1485 = vand.u32 2147483647, %v1474
        %vm1486 = vcmp.eq.f32.partialorder %v1485, 8.507059e+37
        %v1487 = vand.u32 %v1474, 2147483648
        %v1488 = vor.u32 1.1754944e-38, %v1487
        %v1489 = vsel %vm1486, %v1488, %v1484
        %v1490 = vmul.f32 1.0, %v1489
        %v1491 = vrcp.pop %v1475
        %v1492 = vmul.f32 %v1475, %v1491
        %v1493 = vsub.f32 1.0, %v1492
        %v1494 = vmul.f32 %v1491, %v1493
        %v1495 = vadd.f32 %v1491, %v1494
        %vm1496 = vweird.f32 %v1475
        %vm1497 = vweird.f32 %v1491
        %vm1498 = vmor %vm1496, %vm1497
        %v1499 = vsel %vm1498, %v1491, %v1495
        %v1500 = vand.u32 2147483647, %v1475
        %vm1501 = vcmp.eq.f32.partialorder %v1500, 8.507059e+37
        %v1502 = vand.u32 %v1475, 2147483648
        %v1503 = vor.u32 1.1754944e-38, %v1502
        %v1504 = vsel %vm1501, %v1503, %v1499
        %v1505 = vmul.f32 1.0, %v1504
        %v1506 = vmax.f32 %v1490, 0.0001
        %v1507 = vmax.f32 %v1505, 0.0001
        %v1508 = vmin.f32 %v1506, 0.9999
        %v1509 = vmin.f32 %v1507, 0.9999
        %vm1510 = vcmp.eq.f32.partialorder %v1467, 1.0
        %v1511 = vsel %vm1510, 1, 0
        %v1512 = vcvt.s32.f32 %v1511
        %v1513 = vsub.f32 1.0, %v1512
        %v1514 = vsub.f32 1.0, %v1467
        %v1515 = vmul.f32 %v1514, %v1514
        %v1516 = vmul.f32 %v1515, %v1515
        %v1517 = vsub.f32 1.0, %v1508
        %v1518 = vsub.f32 1.0, %v1509
        %v1519 = vlog2.pop %v1508
        %v1520 = vmul.f32 %v1519, 0.6931472
        %v1521 = vlog2.pop %v1509
        %v1522 = vmul.f32 %v1521, 0.6931472
        %v1523 = vmul.f32 %v1517, %v1517
        %v1524 = vmul.f32 %v1518, %v1518
        %v1525 = vmul.f32 %v1520, %v1523
        %v1526 = vmul.f32 %v1522, %v1524
        %1528 = vst [vmem:[#allocation1] ss:$2 sm:$0xff] %v1512
        %v1529 = vld.sshfl [vmem:[#allocation1] sm:$0xff pattern:$0x75316420]
        %v1530 = vld.sshfl [vmem:[#allocation1 + $0x8] sm:$0xff pattern:$0x75316420]
        %v1533 = vmul.f32 %v1525, %v1529
        %v1534 = vmul.f32 %v1526, %v1530
        %v1535 = vlog2.pop %v1517
        %v1536 = vmul.f32 %v1535, 0.6931472
        %v1537 = vlog2.pop %v1518
        %v1538 = vmul.f32 %v1537, 0.6931472
        %v1539 = vmul.f32 %v1508, %v1508
        %v1540 = vmul.f32 %v1509, %v1509
        %v1541 = vmul.f32 %v1536, %v1539
        %v1542 = vmul.f32 %v1538, %v1540
        %1544 = vst [vmem:[#allocation1] ss:$2 sm:$0xff] %v1516
        %v1545 = vld.sshfl [vmem:[#allocation1] sm:$0xff pattern:$0x75316420]
        %v1546 = vld.sshfl [vmem:[#allocation1 + $0x8] sm:$0xff pattern:$0x75316420]
        %v1549 = vmul.f32 %v1541, %v1545
        %v1550 = vmul.f32 %v1542, %v1546
        %1552 = vst [vmem:[#allocation1] ss:$2 sm:$0xff] %v1513
        %v1553 = vld.sshfl [vmem:[#allocation1] sm:$0xff pattern:$0x75316420]
        %v1554 = vld.sshfl [vmem:[#allocation1 + $0x8] sm:$0xff pattern:$0x75316420]
        %v1557 = vmul.f32 %v1549, %v1553
        %v1558 = vmul.f32 %v1550, %v1554
        %s1559 = sld [smem:[#allocation2]]
        %1560 = vst [vmem:[#allocation1] ss:$2 sm:$0xff] %v1512
        %v1561 = vld.sshfl [vmem:[#allocation1] sm:$0xff pattern:$0x75316420]
        %v1562 = vld.sshfl [vmem:[#allocation1 + $0x8] sm:$0xff pattern:$0x75316420]
        %vm1565 = vcmask 1043456
        %v1566 = vsel %vm1565, %v1561, 0.0
        %v1567 = vsel %vm1565, %v1562, 0.0
        %v1568 = vadd.f32 %v1566, %v1567
        %1569 = vadd.xlane.f32.xlu0 %v1568
        %v1570 = vpop.xlane.xlu0 %1569
        %v1571 = vrot.slane %v1570, 4
        %v1572 = vadd.f32 %v1570, %v1571
        %v1573 = vrot.slane %v1572, 2
        %v1574 = vadd.f32 %v1572, %v1573
        %v1575 = vrot.slane %v1574, 1
        %v1576 = vadd.f32 %v1574, %v1575
        %s1577 = vtos %v1576
        %s1578 = sadd.f32 %s1559, %s1577
        %s1579 = scalar_lea.smem [#allocation2], 0
        %1580 = sst [smem:[%s1579]] %s1578
        %s1581 = sld [smem:[#allocation2 + $0x1]]
        %v1582 = vsel %vm1565, %v1533, 0.0
        %v1583 = vsel %vm1565, %v1534, 0.0
        %v1584 = vadd.f32 %v1582, %v1583
        %1585 = vadd.xlane.f32.xlu0 %v1584
        %v1586 = vpop.xlane.xlu0 %1585
        %v1587 = vrot.slane %v1586, 4
        %v1588 = vadd.f32 %v1586, %v1587
        %v1589 = vrot.slane %v1588, 2
        %v1590 = vadd.f32 %v1588, %v1589
        %v1591 = vrot.slane %v1590, 1
        %v1592 = vadd.f32 %v1590, %v1591
        %s1593 = vtos %v1592
        %s1594 = sadd.f32 %s1581, %s1593
        %s1595 = scalar_lea.smem [#allocation2], 1
        %1596 = sst [smem:[%s1595]] %s1594
        %s1597 = sld [smem:[#allocation2 + $0x2]]
        %v1598 = vsel %vm1565, %v1557, 0.0
        %v1599 = vsel %vm1565, %v1558, 0.0
        %v1600 = vadd.f32 %v1598, %v1599
        %1601 = vadd.xlane.f32.xlu0 %v1600
        %v1602 = vpop.xlane.xlu0 %1601
        %v1603 = vrot.slane %v1602, 4
        %v1604 = vadd.f32 %v1602, %v1603
        %v1605 = vrot.slane %v1604, 2
        %v1606 = vadd.f32 %v1604, %v1605
        %v1607 = vrot.slane %v1606, 1
        %v1608 = vadd.f32 %v1606, %v1607
        %s1609 = vtos %v1608
        %s1610 = sadd.f32 %s1597, %s1609
        %s1611 = scalar_lea.smem [#allocation2], 2
        %1612 = sst [smem:[%s1611]] %s1610
        %v1613 = vld [vmem:[%s506] sm:$0x3]
        %s1614 = sld [smem:[#allocation2 + $0x3]]
        %v1615 = vld [vmem:[%s497] sm:$0xf]
        %s1617 = scalar_lea.vmem [#allocation1], 2
        %1618 = vst [vmem:[%s1617] ss:$4 sm:$0xff] %v1615
        %v1619 = vld.sshfl [vmem:[#allocation1] sm:$0xff pattern:$0x73625140]
        %v1620 = vld.sshfl [vmem:[#allocation1 + $0x8] sm:$0xff pattern:$0x73625140]
        %v1623 = vsub.f32 %v1445, %v1619
        %v1624 = vsub.f32 %v1459, %v1620
        %v1625 = vand.u32 2147483647, %v1623
        %v1626 = vand.u32 2147483647, %v1624
        %v1628 = vperm.slane %v1613, 0
        %v1629 = vperm.slane %v1613, 1
        %v1632 = vmul.f32 %v1625, %v1628
        %v1633 = vmul.f32 %v1626, %v1629
        %v1636 = vrot.slane %v1632, 4
        %v1637 = vrot.slane %v1633, 4
        %v1640 = vsel %vm605, %v1636, 0.0
        %v1641 = vsel %vm605, %v1637, 0.0
        %v1642 = vadd.f32 %v1640, %v1641
        %1643 = vadd.xlane.f32.xlu0 %v1642
        %v1644 = vpop.xlane.xlu0 %1643
        %v1645 = vrot.slane %v1644, 4
        %v1646 = vadd.f32 %v1644, %v1645
        %v1647 = vrot.slane %v1646, 2
        %v1648 = vadd.f32 %v1646, %v1647
        %v1649 = vrot.slane %v1648, 1
        %v1650 = vadd.f32 %v1648, %v1649
        %s1651 = vtos %v1650
        %s1652 = sadd.f32 %s1614, %s1651
        %s1653 = scalar_lea.smem [#allocation2], 3
        %1654 = sst [smem:[%s1653]] %s1652
        %s1655 = sld [smem:[#allocation2 + $0x4]]
        %v1656 = vld [vmem:[%s502] sm:$0x77]
        %1658 = vst [vmem:[#allocation1] ss:$2 sm:$0xff] %v1656
        %v1659 = vld.sshfl [vmem:[#allocation1] sm:$0xff pattern:$0x75316420]
        %v1660 = vld.sshfl [vmem:[#allocation1 + $0x8] sm:$0xff pattern:$0x75316420]
        %v1661 = vrot.slane %v1659, 2
        %v1662 = vrot.slane %v1660, 2
        %v1665 = vsub.f32 %v1445, %v1661
        %v1666 = vsub.f32 %v1459, %v1662
        %v1667 = vsub.f32 %v1447, %v1661
        %v1668 = vsub.f32 %v1461, %v1662
        %v1669 = vand.u32 2147483647, %v1665
        %v1670 = vand.u32 2147483647, %v1666
        %v1671 = vand.u32 2147483647, %v1667
        %v1672 = vand.u32 2147483647, %v1668
        %v1673 = vmul.f32 %v1669, %v1628
        %v1674 = vmul.f32 %v1670, %v1629
        %v1675 = vmul.f32 %v1671, %v1628
        %v1676 = vmul.f32 %v1672, %v1629
        %v1681 = vrot.slane %v1673, 6
        %v1682 = vrot.slane %v1675, 6
        %v1683 = vsel %vm605, %v1681, %v1682
        %v1684 = vrot.slane %v1674, 6
        %v1685 = vrot.slane %v1676, 6
        %v1686 = vsel %vm605, %v1684, %v1685
        %vm1689 = vcmask 1042432
        %v1690 = vsel %vm1689, %v1683, 0.0
        %v1691 = vsel %vm1689, %v1686, 0.0
        %v1692 = vadd.f32 %v1690, %v1691
        %1693 = vadd.xlane.f32.xlu0 %v1692
        %v1694 = vpop.xlane.xlu0 %1693
        %v1695 = vrot.slane %v1694, 4
        %v1696 = vadd.f32 %v1694, %v1695
        %v1697 = vrot.slane %v1696, 2
        %v1698 = vadd.f32 %v1696, %v1697
        %v1699 = vrot.slane %v1698, 1
        %v1700 = vadd.f32 %v1698, %v1699
        %s1701 = vtos %v1700
        %s1702 = sadd.f32 %s1655, %s1701
        %s1703 = scalar_lea.smem [#allocation2], 4
        %1704 = sst [smem:[%s1703]] %s1702
        %s1705 = sld [smem:[#allocation2 + $0x5]]
        %v1706 = vsel %vm604, %v1628, 0.0
        %v1707 = vsel %vm604, %v1629, 0.0
        %v1708 = vadd.f32 %v1706, %v1707
        %1709 = vadd.xlane.f32.xlu0 %v1708
        %v1710 = vpop.xlane.xlu0 %1709
        %v1711 = vrot.slane %v1710, 4
        %v1712 = vadd.f32 %v1710, %v1711
        %v1713 = vrot.slane %v1712, 2
        %v1714 = vadd.f32 %v1712, %v1713
        %v1715 = vrot.slane %v1714, 1
        %v1716 = vadd.f32 %v1714, %v1715
        %s1717 = vtos %v1716
        %s1718 = sadd.f32 %s1705, %s1717
        %s1719 = scalar_lea.smem [#allocation2], 5
        %1720 = sst [smem:[%s1719]] %s1718
        %p1721 = scmp.eq.s32.totalorder %s27, 1
        // Predicated region
        $region65: #{_forward_train.1} parent=59 // pred_check
          %p1722 = pneg %p1721
        $region66: #{_forward_train.1} parent=59 // pred_check_branch
          %1724 = sbr.rel (%p1722) target = $region68
        $region67: #{_forward_train.1} parent=59 // pred_region
          %s1725 = sld [smem:[#allocation2]]
          %s1726 = sld [smem:[#allocation2 + $0x1]]
          %s1727 = sld [smem:[#allocation2 + $0x2]]
          %p1728 = scmp.gt.f32.partialorder %s1725, 0.0
          %s1729 = sadd.f32 %s1726, %s1727
          %s1730 = ssub.f32 0.0, %s1729
          %s1731 = smax.f32 %s1725, 1.0
          %v1732 = vstv %s1731
          %v1733 = vrcp.pop %v1732
          %v1734 = vmul.f32 %v1732, %v1733
          %v1735 = vsub.f32 1.0, %v1734
          %v1736 = vmul.f32 %v1733, %v1735
          %v1737 = vadd.f32 %v1733, %v1736
          %vm1738 = vweird.f32 %v1732
          %vm1739 = vweird.f32 %v1733
          %vm1740 = vmor %vm1738, %vm1739
          %v1741 = vsel %vm1740, %v1733, %v1737
          %v1742 = vand.u32 2147483647, %v1732
          %vm1743 = vcmp.eq.f32.partialorder %v1742, 8.507059e+37
          %v1744 = vand.u32 %v1732, 2147483648
          %v1745 = vor.u32 1.1754944e-38, %v1744
          %v1746 = vsel %vm1743, %v1745, %v1741
          %s1747 = vtos %v1746
          %s1748 = smul.f32 %s1730, %s1747
          %s1749 = ssub.f32 0.0, %s1727
          %s1750 = scalar_select %p1728, %s1748, %s1749
          %s1751 = scalar_lea.smem [#allocation3], 0
          %1752 = sst [smem:[%s1751]] %s1750
          %s1753 = sld [smem:[#allocation2 + $0x5]]
          %s1754 = sadd.f32 %s1753, 0.0001
          %s1755 = sld [smem:[#allocation2 + $0x3]]
          %v1756 = vstv %s1754
          %v1757 = vrcp.pop %v1756
          %v1758 = vmul.f32 %v1756, %v1757
          %v1759 = vsub.f32 1.0, %v1758
          %v1760 = vmul.f32 %v1757, %v1759
          %v1761 = vadd.f32 %v1757, %v1760
          %vm1762 = vweird.f32 %v1756
          %vm1763 = vweird.f32 %v1757
          %vm1764 = vmor %vm1762, %vm1763
          %v1765 = vsel %vm1764, %v1757, %v1761
          %v1766 = vand.u32 2147483647, %v1756
          %vm1767 = vcmp.eq.f32.partialorder %v1766, 8.507059e+37
          %v1768 = vand.u32 %v1756, 2147483648
          %v1769 = vor.u32 1.1754944e-38, %v1768
          %v1770 = vsel %vm1767, %v1769, %v1765
          %s1771 = vtos %v1770
          %s1772 = smul.f32 %s1755, %s1771
          %s1773 = scalar_lea.smem [#allocation5], 0
          %1774 = sst [smem:[%s1773]] %s1772
          %s1775 = sld [smem:[#allocation2 + $0x4]]
          %v1776 = vstv %s1754
          %v1777 = vrcp.pop %v1776
          %v1778 = vmul.f32 %v1776, %v1777
          %v1779 = vsub.f32 1.0, %v1778
          %v1780 = vmul.f32 %v1777, %v1779
          %v1781 = vadd.f32 %v1777, %v1780
          %vm1782 = vweird.f32 %v1776
          %vm1783 = vweird.f32 %v1777
          %vm1784 = vmor %vm1782, %vm1783
          %v1785 = vsel %vm1784, %v1777, %v1781
          %v1786 = vand.u32 2147483647, %v1776
          %vm1787 = vcmp.eq.f32.partialorder %v1786, 8.507059e+37
          %v1788 = vand.u32 %v1776, 2147483648
          %v1789 = vor.u32 1.1754944e-38, %v1788
          %v1790 = vsel %vm1787, %v1789, %v1785
          %s1791 = vtos %v1790
          %s1792 = smul.f32 %s1775, %s1791
          %s1793 = scalar_lea.smem [#allocation7], 0
          %1794 = sst [smem:[%s1793]] %s1792
        $region68: #{_forward_train.1} parent=59 // pred_fallthru
          _
        %p1795 = scmp.lt.s32.totalorder %s27, 1
        %s1796 = scalar_select %p1795, %s27, 1
        %s1797 = smul.addr %s1796, 4
        %s1798 = smul.addr %s1797, 8
        %s1799 = scalar_lea.vmem %s10, %s1798
        // Predicated region
        $region69: #{_forward_train.1} parent=59 // pred_check
          %p1800 = pneg %p280
        $region70: #{_forward_train.1} parent=59 // pred_check_branch
          %1802 = sbr.rel (%p1800) target = $region72
        $region71: #{_forward_train.1} parent=59 // pred_region
          _
        $region72: #{_forward_train.1} parent=59 // pred_fallthru
          _
        // Predicated region
        $region73: #{_forward_train.1} parent=59 // pred_check
          %p1803 = pneg %p301
        $region74: #{_forward_train.1} parent=59 // pred_check_branch
          %1805 = sbr.rel (%p1803) target = $region76
        $region75: #{_forward_train.1} parent=59 // pred_region
          %1807 = vsyncadd [#allocation4], 0
          %s1809 = sshll.u32 %s11, 4
          %s1810 = int_to_ptr.hbm [resolvable:$true] %s1809
          %1812 = dma.smem_to_hbm [#allocation3], 16, %s1810, [#allocation4]
        $region76: #{_forward_train.1} parent=59 // pred_fallthru
          _
        // Predicated region
        $region77: #{_forward_train.1} parent=59 // pred_check
          %p1813 = pneg %p322
        $region78: #{_forward_train.1} parent=59 // pred_check_branch
          %1815 = sbr.rel (%p1813) target = $region80
        $region79: #{_forward_train.1} parent=59 // pred_region
          %1817 = vsyncadd [#allocation6], 0
          %s1819 = sshll.u32 %s12, 4
          %s1820 = int_to_ptr.hbm [resolvable:$true] %s1819
          %1822 = dma.smem_to_hbm [#allocation5], 16, %s1820, [#allocation6]
        $region80: #{_forward_train.1} parent=59 // pred_fallthru
          _
        // Predicated region
        $region81: #{_forward_train.1} parent=59 // pred_check
          %p1823 = pneg %p343
        $region82: #{_forward_train.1} parent=59 // pred_check_branch
          %1825 = sbr.rel (%p1823) target = $region84
        $region83: #{_forward_train.1} parent=59 // pred_region
          %1827 = vsyncadd [#allocation6], 0
          %s1829 = sshll.u32 %s13, 4
          %s1830 = int_to_ptr.hbm [resolvable:$true] %s1829
          %1832 = dma.smem_to_hbm [#allocation7], 16, %s1830, [#allocation6]
        $region84: #{_forward_train.1} parent=59 // pred_fallthru
          _
        // Predicated region
        $region85: #{_forward_train.1} parent=59 // pred_check
          %p1833 = pneg %p301
        $region86: #{_forward_train.1} parent=59 // pred_check_branch
          %1835 = sbr.rel (%p1833) target = $region88
        $region87: #{_forward_train.1} parent=59 // pred_region
          %1837 = dma.done [#allocation4], 16
        $region88: #{_forward_train.1} parent=59 // pred_fallthru
          _
        // Predicated region
        $region89: #{_forward_train.1} parent=59 // pred_check
          %p1838 = pneg %p322
        $region90: #{_forward_train.1} parent=59 // pred_check_branch
          %1840 = sbr.rel (%p1838) target = $region92
        $region91: #{_forward_train.1} parent=59 // pred_region
          %1842 = dma.done [#allocation6], 16
        $region92: #{_forward_train.1} parent=59 // pred_fallthru
          _
        // Predicated region
        $region93: #{_forward_train.1} parent=59 // pred_check
          %p1843 = pneg %p343
        $region94: #{_forward_train.1} parent=59 // pred_check_branch
          %1845 = sbr.rel (%p1843) target = $region96
        $region95: #{_forward_train.1} parent=59 // pred_region
          %1847 = dma.done [#allocation6], 16
        $region96: #{_forward_train.1} parent=59 // pred_fallthru
          _
        %1848 = sfence
      $region60: #{_forward_train.1} parent=5 // pred_fallthru
        _
      %p1849 = scmp.le.s32.totalorder 2, %s22
      // Predicated region
      $region97: #{_forward_train.1} parent=5 // pred_check
        %p1850 = pneg %p1849
      $region98: #{_forward_train.1} parent=5 // pred_check_branch
        %1852 = sbr.rel (%p1850) target = $region100
      $region99: #{_forward_train.1} parent=5 // pred_region
        %s1853 = ssub.s32 %s22, 2
        // Predicated region
        $region101: #{_forward_train.1} parent=99 // pred_check
          %p1854 = pneg %p286
        $region102: #{_forward_train.1} parent=99 // pred_check_branch
          %1856 = sbr.rel (%p1854) target = $region104
        $region103: #{_forward_train.1} parent=99 // pred_region
          %p1857 = scmp.lt.s32.totalorder %s28, 1
          %s1858 = scalar_select %p1857, %s28, 1
          %s1859 = smul.addr %s1858, 4
          %s1860 = smul.addr %s1859, 8
          %s1861 = scalar_lea.vmem %s10, %s1860
        $region104: #{_forward_train.1} parent=99 // pred_fallthru
          _
      $region100: #{_forward_train.1} parent=5 // pred_fallthru
        _
    $region6: #{_forward_train.1} parent=1 // loop_footer
      %s26 = sadd.s32 1, %s22
    $region7: #{_forward_train.1} parent=1 // loop_footer_branch
      %21 = sbr.rel target = $region3
    $region8: #{_forward_train.1} parent=1 // loop_exit
      _
    %1862 = vsyncpa [#allocation4], 1
    %s1863 = scalar_lea.sflag [#allocation4], 1
    %1864 = vsyncpa %s1863, 1
    %1865 = vsyncpa [#allocation6], 1

</llo_original>
